<compile_context>
chip_gen: v7x
topology: tpu7x:2x2x1
jax: 0.10.0
libtpu: 0.0.40
codegen_flags: <defaults>
</compile_context>

<pallas_src>
import jax
import jax.numpy as jnp
from jax import lax
from jax.experimental import pallas as pl
from jax.experimental.pallas import tpu as pltpu


def _round_up(x, m):
    return (x + m - 1) // m * m


def rnn_chunk_kernel(emb_ref, wcat_ref, b_ref, len_ref, out_ref, h_ref):
    """One chunk of Tc timesteps per grid iteration.

    emb_ref : (Tc, Bb, Ep)   time-major embedded input chunk (lane-padded E)
    wcat_ref: (Ep+Hp, Hp)    fused [W_ih^T ; W_hh^T], zero-padded
    b_ref   : (1, Hp)        b_ih + b_hh, zero-padded
    len_ref : (Bb, 1)        int32 sequence lengths (0 for padded batch rows)
    out_ref : (Tc, Bb, Hp)   time-major output chunk
    h_ref   : (Bb, Hp)       VMEM scratch, hidden state carried across chunks
    """
    c = pl.program_id(1)          # time-chunk index (sequential axis)
    Tc = emb_ref.shape[0]

    @pl.when(c == 0)
    def _():
        h_ref[...] = jnp.zeros_like(h_ref)

    bias = b_ref[...]             # (1, Hp)   hoisted out of the inner loop
    lens = len_ref[...]           # (Bb, 1)
    t0 = c * Tc

    def step(i, carry):
        x_t = emb_ref[i]                                   # (Bb, Ep)
        h_prev = h_ref[...]                                # (Bb, Hp)
        xh = jnp.concatenate([x_t, h_prev], axis=-1)       # (Bb, Ep+Hp)
        pre = jnp.dot(xh, wcat_ref[...],
                      preferred_element_type=jnp.float32) + bias
        h_new = jnp.tanh(pre)                              # (Bb, Hp)

        valid = (t0 + i) < lens                            # (Bb, 1) bool
        out_ref[i] = jnp.where(valid, h_new, 0.0)          # pad positions -> 0
        h_ref[...] = jnp.where(valid, h_new, h_prev)       # freeze h past len
        return carry

    # Short fixed trip count -> unroll so LLO can overlap MXU/EUP/VPU across
    # timesteps within the chunk.
    lax.fori_loop(0, Tc, step, 0, unroll=True)


def rnn_backbone_forward(x_tokens, seq_lengths, emb_table, w_ih, w_hh, b_ih,
                         b_hh, max_seq_len, *, time_chunk=8, batch_block=None):
    """
    x_tokens   : (B, T) int32 token ids
    seq_lengths: (B,)   int32
    emb_table  : (V, E) float32
    w_ih       : (H, E) float32   (PyTorch weight_ih_l0 layout)
    w_hh       : (H, H) float32   (PyTorch weight_hh_l0 layout)
    b_ih, b_hh : (H,)   float32
    returns    : (B, max_seq_len, H) float32
    """
    B, T = x_tokens.shape
    E = emb_table.shape[1]
    H = w_hh.shape[0]

    Tc = time_chunk
    Bp = _round_up(B, 8)                      # sublane-dense batch
    Hp = _round_up(H, 128)                    # lane-dense hidden
    Ep = _round_up(E, 128)                    # lane-dense embedding
    Tp = _round_up(max(T, max_seq_len), Tc)   # whole chunks of timesteps
    Bb = batch_block if batch_block is not None else min(Bp, 128)
    assert Bp % Bb == 0 and Bb % 8 == 0

    # Time-major token matrix, padded.  Padded slots use token 0; they are
    # masked by seq_lengths inside the kernel and sliced away below.
    tok_tm = jnp.zeros((Tp, Bp), jnp.int32).at[:T, :B].set(
        x_tokens.astype(jnp.int32).T)

    # Pad the embedding table's feature dim once so the time-major gather
    # already produces 128-lane-dense activations (no extra pad/transpose
    # pass over the (T, B, E) tensor).  emb_drop is identity at inference.
    emb_pad = jnp.pad(emb_table.astype(jnp.float32), ((0, 0), (0, Ep - E)))
    emb_tm = emb_pad[tok_tm]                                  # (Tp, Bp, Ep)

    # Fused, zero-padded weight: pre = [x_t | h_prev] @ W_cat + bias.
    # Zero pad rows/cols guarantee padded lanes of h stay exactly 0.
    w_cat = jnp.zeros((Ep + Hp, Hp), jnp.float32)
    w_cat = w_cat.at[:E, :H].set(jnp.transpose(w_ih).astype(jnp.float32))
    w_cat = w_cat.at[Ep:Ep + H, :H].set(jnp.transpose(w_hh).astype(jnp.float32))
    bias = jnp.zeros((1, Hp), jnp.float32).at[0, :H].set(
        (b_ih + b_hh).astype(jnp.float32))
    lens = jnp.zeros((Bp, 1), jnp.int32).at[:B, 0].set(
        seq_lengths.astype(jnp.int32))

    grid = (Bp // Bb, Tp // Tc)

    out_tm = pl.pallas_call(
        rnn_chunk_kernel,
        out_shape=jax.ShapeDtypeStruct((Tp, Bp, Hp), jnp.float32),
        grid_spec=pltpu.PrefetchScalarGridSpec(
            num_scalar_prefetch=0,
            grid=grid,
            in_specs=[
                pl.BlockSpec((Tc, Bb, Ep), lambda b, c: (c, b, 0)),   # emb chunk
                pl.BlockSpec((Ep + Hp, Hp), lambda b, c: (0, 0)),     # W_cat
                pl.BlockSpec((1, Hp), lambda b, c: (0, 0)),           # bias
                pl.BlockSpec((Bb, 1), lambda b, c: (b, 0)),           # lengths
            ],
            out_specs=pl.BlockSpec((Tc, Bb, Hp), lambda b, c: (c, b, 0)),
            scratch_shapes=[pltpu.VMEM((Bb, Hp), jnp.float32)],       # hidden
        ),
        compiler_params=pltpu.CompilerParams(
            # batch blocks are independent (megacore-shardable); time chunks
            # carry the recurrence and must run sequentially.
            dimension_semantics=("parallel", "arbitrary"),
        ),
    )(emb_tm, w_cat, bias, lens)

    # Single layout pass back to the module's batch_first contract, then
    # drop batch/time/lane padding.
    out = jnp.transpose(out_tm, (1, 0, 2))
    return out[:B, :max_seq_len, :H]


def rnn_backbone_reference(x_tokens, seq_lengths, emb_table, w_ih, w_hh, b_ih,
                           b_hh, max_seq_len):
    """Pure-JAX reference with identical packed-sequence semantics."""
    B, T = x_tokens.shape
    H = w_hh.shape[0]
    emb = emb_table[x_tokens]                      # (B, T, E)
    wih_t = jnp.transpose(w_ih)
    whh_t = jnp.transpose(w_hh)
    bias = b_ih + b_hh

    def step(h, inp):
        x_t, t = inp
        h_new = jnp.tanh(x_t @ wih_t + h @ whh_t + bias)
        valid = (t < seq_lengths)[:, None]
        out = jnp.where(valid, h_new, 0.0)
        h = jnp.where(valid, h_new, h)
        return h, out

    xs = (jnp.transpose(emb, (1, 0, 2)), jnp.arange(T, dtype=jnp.int32))
    _, outs = lax.scan(step, jnp.zeros((B, H), jnp.float32), xs)
    outs = jnp.transpose(outs, (1, 0, 2))          # (B, T, H)
    if T < max_seq_len:
        outs = jnp.pad(outs, ((0, 0), (0, max_seq_len - T), (0, 0)))
    return outs


if __name__ == "__main__":
    # Small shapes consistent with the module's forward.
    B = 2            # batch size
    T = 8            # seq length == max_seq_len
    V = 50           # vocab size
    E = 32           # embedding out_ftrs
    H = 32           # hidden_ftrs

    key = jax.random.PRNGKey(0)
    k_emb, k_wih, k_whh, k_bih, k_bhh, k_x = jax.random.split(key, 6)

    # Deterministic synthetic parameters (nn.Embedding + nn.RNN shapes).
    emb_table = jax.random.normal(k_emb, (V, E), jnp.float32) * 0.1
    w_ih = jax.random.normal(k_wih, (H, E), jnp.float32) * 0.1   # weight_ih_l0
    w_hh = jax.random.normal(k_whh, (H, H), jnp.float32) * 0.1   # weight_hh_l0
    b_ih = jax.random.normal(k_bih, (H,), jnp.float32) * 0.1
    b_hh = jax.random.normal(k_bhh, (H,), jnp.float32) * 0.1

    x_tokens = jax.random.randint(k_x, (B, T), 0, V, dtype=jnp.int32)
    seq_lengths = jnp.array([8, 5], dtype=jnp.int32)

    out = rnn_backbone_forward(x_tokens, seq_lengths, emb_table, w_ih, w_hh,
                               b_ih, b_hh, max_seq_len=T)
    out = jax.block_until_ready(out)

    ref = rnn_backbone_reference(x_tokens, seq_lengths, emb_table, w_ih, w_hh,
                                 b_ih, b_hh, max_seq_len=T)
    assert out.shape == (B, T, H)
    assert jnp.allclose(out, ref, atol=1e-4, rtol=1e-4), "mismatch vs reference"

    # TODO(synk): emb_drop / rnn_drop are inference-mode identities; training-mode
    # dropout (and the LSTM rnn_cls variant) not implemented.
    print("KERNEL_OK")
</pallas_src>

<mosaic_0001>
module attributes {stable_mosaic.version = 11 : i64} {
  func.func @rnn_chunk_kernel(%arg0: i32, %arg1: i32, %arg2: memref<8x8x128xf32, #tpu.memory_space<vmem>>, %arg3: memref<256x128xf32, #tpu.memory_space<vmem>>, %arg4: memref<1x128xf32, #tpu.memory_space<vmem>>, %arg5: memref<8x1xi32, #tpu.memory_space<vmem>>, %arg6: memref<8x8x128xf32, #tpu.memory_space<vmem>>, %arg7: memref<8x128xf32, #tpu.memory_space<vmem>>) attributes {dimension_semantics = [#tpu.dimension_semantics<parallel>, #tpu.dimension_semantics<arbitrary>], iteration_bounds = array<i64: 1, 1>, scalar_prefetch = 0 : i64, scratch_operands = 1 : i64, tpu.core_type = #tpu.core_type<tc>, window_params = [{transform_indices = @transform_0, window_bounds = array<i64: 8, 8, 128>}, {pipeline_mode = #tpu.pipeline_mode<synchronous>, transform_indices = @transform_1, window_bounds = array<i64: 256, 128>}, {pipeline_mode = #tpu.pipeline_mode<synchronous>, transform_indices = @transform_2, window_bounds = array<i64: 1, 128>}, {transform_indices = @transform_3, window_bounds = array<i64: 8, 1>}, {transform_indices = @transform_4, window_bounds = array<i64: 8, 8, 128>}]} {
    %c0_i32 = arith.constant 0 : i32
    %0 = arith.cmpi eq, %arg1, %c0_i32 : i32
    %1 = arith.extui %0 : i1 to i32
    %c0_i32_0 = arith.constant 0 : i32
    %2 = arith.cmpi ne, %1, %c0_i32_0 : i32
    scf.if %2 {
      %cst_101 = arith.constant 0.000000e+00 : f32
      %206 = vector.broadcast %cst_101 : f32 to vector<8x128xf32>
      %c0_102 = arith.constant 0 : index
      %c0_103 = arith.constant 0 : index
      %207 = vector.load %arg7[%c0_102, %c0_103] : memref<8x128xf32, #tpu.memory_space<vmem>>, vector<8x128xf32>
      tpu.vector_store %arg7[%c0_102, %c0_103], %206 {strides = array<i32>} : memref<8x128xf32, #tpu.memory_space<vmem>>, vector<8x128xf32>,
    } else {
    }
    %c0 = arith.constant 0 : index
    %c0_1 = arith.constant 0 : index
    %3 = vector.load %arg4[%c0, %c0_1] : memref<1x128xf32, #tpu.memory_space<vmem>>, vector<1x128xf32>
    %c0_2 = arith.constant 0 : index
    %c0_3 = arith.constant 0 : index
    %4 = vector.load %arg5[%c0_2, %c0_3] : memref<8x1xi32, #tpu.memory_space<vmem>>, vector<8x1xi32>
    %c8_i32 = arith.constant 8 : i32
    %5 = arith.muli %arg1, %c8_i32 : i32
    %c0_i32_4 = arith.constant 0 : i32
    %6 = arith.index_cast %c0_i32_4 : i32 to index
    %c0_5 = arith.constant 0 : index
    %c0_6 = arith.constant 0 : index
    %7 = vector.load %arg2[%6, %c0_5, %c0_6] : memref<8x8x128xf32, #tpu.memory_space<vmem>>, vector<1x8x128xf32>
    %8 = vector.shape_cast %7 : vector<1x8x128xf32> to vector<8x128xf32>
    %c0_7 = arith.constant 0 : index
    %c0_8 = arith.constant 0 : index
    %9 = vector.load %arg7[%c0_7, %c0_8] : memref<8x128xf32, #tpu.memory_space<vmem>>, vector<8x128xf32>
    %10 = tpu.concatenate %8, %9 in 1 : vector<8x128xf32>, vector<8x128xf32> -> vector<8x256xf32>
    %c0_9 = arith.constant 0 : index
    %c0_10 = arith.constant 0 : index
    %11 = vector.load %arg3[%c0_9, %c0_10] : memref<256x128xf32, #tpu.memory_space<vmem>>, vector<256x128xf32>
    %cst = arith.constant dense<0.000000e+00> : vector<8x128xf32>
    %12 = tpu.matmul %10, %11, %cst {dimension_numbers = #tpu.dot_dimension_numbers<[1], [0], [0], [1], [0, 0, 1, 1], [], []>} : vector<8x256xf32>, vector<256x128xf32>, vector<8x128xf32> -> vector<8x128xf32>
    %13 = vector.broadcast %3 : vector<1x128xf32> to vector<8x128xf32>
    %14 = arith.addf %12, %13 : vector<8x128xf32>
    %15 = math.tanh %14 : vector<8x128xf32>
    %16 = arith.addi %5, %c0_i32_4 : i32
    %17 = vector.broadcast %16 : i32 to vector<8x1xi32>
    %18 = arith.cmpi slt, %17, %4 : vector<8x1xi32>
    %cst_11 = arith.constant 0.000000e+00 : f32
    %19 = vector.shape_cast %18 : vector<8x1xi1> to vector<8x1xi1>
    %20 = vector.broadcast %19 : vector<8x1xi1> to vector<8x128xi1>
    %21 = vector.broadcast %cst_11 : f32 to vector<8x128xf32>
    %22 = arith.select %20, %15, %21 : vector<8x128xi1>, vector<8x128xf32>
    %23 = arith.index_cast %c0_i32_4 : i32 to index
    %c0_12 = arith.constant 0 : index
    %c0_13 = arith.constant 0 : index
    %24 = vector.load %arg6[%23, %c0_12, %c0_13] : memref<8x8x128xf32, #tpu.memory_space<vmem>>, vector<1x8x128xf32>
    %25 = vector.shape_cast %24 : vector<1x8x128xf32> to vector<8x128xf32>
    %26 = vector.shape_cast %22 : vector<8x128xf32> to vector<1x8x128xf32>
    tpu.vector_store %arg6[%23, %c0_12, %c0_13], %26 {strides = array<i32>} : memref<8x8x128xf32, #tpu.memory_space<vmem>>, vector<1x8x128xf32>,
    %27 = vector.shape_cast %18 : vector<8x1xi1> to vector<8x1xi1>
    %28 = vector.broadcast %27 : vector<8x1xi1> to vector<8x128xi1>
    %29 = arith.select %28, %15, %9 : vector<8x128xi1>, vector<8x128xf32>
    %c0_14 = arith.constant 0 : index
    %c0_15 = arith.constant 0 : index
    %30 = vector.load %arg7[%c0_14, %c0_15] : memref<8x128xf32, #tpu.memory_space<vmem>>, vector<8x128xf32>
    tpu.vector_store %arg7[%c0_14, %c0_15], %29 {strides = array<i32>} : memref<8x128xf32, #tpu.memory_space<vmem>>, vector<8x128xf32>,
    %c1_i32 = arith.constant 1 : i32
    %31 = arith.index_cast %c1_i32 : i32 to index
    %c0_16 = arith.constant 0 : index
    %c0_17 = arith.constant 0 : index
    %32 = vector.load %arg2[%31, %c0_16, %c0_17] : memref<8x8x128xf32, #tpu.memory_space<vmem>>, vector<1x8x128xf32>
    %33 = vector.shape_cast %32 : vector<1x8x128xf32> to vector<8x128xf32>
    %c0_18 = arith.constant 0 : index
    %c0_19 = arith.constant 0 : index
    %34 = vector.load %arg7[%c0_18, %c0_19] : memref<8x128xf32, #tpu.memory_space<vmem>>, vector<8x128xf32>
    %35 = tpu.concatenate %33, %34 in 1 : vector<8x128xf32>, vector<8x128xf32> -> vector<8x256xf32>
    %c0_20 = arith.constant 0 : index
    %c0_21 = arith.constant 0 : index
    %36 = vector.load %arg3[%c0_20, %c0_21] : memref<256x128xf32, #tpu.memory_space<vmem>>, vector<256x128xf32>
    %cst_22 = arith.constant dense<0.000000e+00> : vector<8x128xf32>
    %37 = tpu.matmul %35, %36, %cst_22 {dimension_numbers = #tpu.dot_dimension_numbers<[1], [0], [0], [1], [0, 0, 1, 1], [], []>} : vector<8x256xf32>, vector<256x128xf32>, vector<8x128xf32> -> vector<8x128xf32>
    %38 = vector.broadcast %3 : vector<1x128xf32> to vector<8x128xf32>
    %39 = arith.addf %37, %38 : vector<8x128xf32>
    %40 = math.tanh %39 : vector<8x128xf32>
    %41 = arith.addi %5, %c1_i32 : i32
    %42 = vector.broadcast %41 : i32 to vector<8x1xi32>
    %43 = arith.cmpi slt, %42, %4 : vector<8x1xi32>
    %cst_23 = arith.constant 0.000000e+00 : f32
    %44 = vector.shape_cast %43 : vector<8x1xi1> to vector<8x1xi1>
    %45 = vector.broadcast %44 : vector<8x1xi1> to vector<8x128xi1>
    %46 = vector.broadcast %cst_23 : f32 to vector<8x128xf32>
    %47 = arith.select %45, %40, %46 : vector<8x128xi1>, vector<8x128xf32>
    %48 = arith.index_cast %c1_i32 : i32 to index
    %c0_24 = arith.constant 0 : index
    %c0_25 = arith.constant 0 : index
    %49 = vector.load %arg6[%48, %c0_24, %c0_25] : memref<8x8x128xf32, #tpu.memory_space<vmem>>, vector<1x8x128xf32>
    %50 = vector.shape_cast %49 : vector<1x8x128xf32> to vector<8x128xf32>
    %51 = vector.shape_cast %47 : vector<8x128xf32> to vector<1x8x128xf32>
    tpu.vector_store %arg6[%48, %c0_24, %c0_25], %51 {strides = array<i32>} : memref<8x8x128xf32, #tpu.memory_space<vmem>>, vector<1x8x128xf32>,
    %52 = vector.shape_cast %43 : vector<8x1xi1> to vector<8x1xi1>
    %53 = vector.broadcast %52 : vector<8x1xi1> to vector<8x128xi1>
    %54 = arith.select %53, %40, %34 : vector<8x128xi1>, vector<8x128xf32>
    %c0_26 = arith.constant 0 : index
    %c0_27 = arith.constant 0 : index
    %55 = vector.load %arg7[%c0_26, %c0_27] : memref<8x128xf32, #tpu.memory_space<vmem>>, vector<8x128xf32>
    tpu.vector_store %arg7[%c0_26, %c0_27], %54 {strides = array<i32>} : memref<8x128xf32, #tpu.memory_space<vmem>>, vector<8x128xf32>,
    %c2_i32 = arith.constant 2 : i32
    %56 = arith.index_cast %c2_i32 : i32 to index
    %c0_28 = arith.constant 0 : index
    %c0_29 = arith.constant 0 : index
    %57 = vector.load %arg2[%56, %c0_28, %c0_29] : memref<8x8x128xf32, #tpu.memory_space<vmem>>, vector<1x8x128xf32>
    %58 = vector.shape_cast %57 : vector<1x8x128xf32> to vector<8x128xf32>
    %c0_30 = arith.constant 0 : index
    %c0_31 = arith.constant 0 : index
    %59 = vector.load %arg7[%c0_30, %c0_31] : memref<8x128xf32, #tpu.memory_space<vmem>>, vector<8x128xf32>
    %60 = tpu.concatenate %58, %59 in 1 : vector<8x128xf32>, vector<8x128xf32> -> vector<8x256xf32>
    %c0_32 = arith.constant 0 : index
    %c0_33 = arith.constant 0 : index
    %61 = vector.load %arg3[%c0_32, %c0_33] : memref<256x128xf32, #tpu.memory_space<vmem>>, vector<256x128xf32>
    %cst_34 = arith.constant dense<0.000000e+00> : vector<8x128xf32>
    %62 = tpu.matmul %60, %61, %cst_34 {dimension_numbers = #tpu.dot_dimension_numbers<[1], [0], [0], [1], [0, 0, 1, 1], [], []>} : vector<8x256xf32>, vector<256x128xf32>, vector<8x128xf32> -> vector<8x128xf32>
    %63 = vector.broadcast %3 : vector<1x128xf32> to vector<8x128xf32>
    %64 = arith.addf %62, %63 : vector<8x128xf32>
    %65 = math.tanh %64 : vector<8x128xf32>
    %66 = arith.addi %5, %c2_i32 : i32
    %67 = vector.broadcast %66 : i32 to vector<8x1xi32>
    %68 = arith.cmpi slt, %67, %4 : vector<8x1xi32>
    %cst_35 = arith.constant 0.000000e+00 : f32
    %69 = vector.shape_cast %68 : vector<8x1xi1> to vector<8x1xi1>
    %70 = vector.broadcast %69 : vector<8x1xi1> to vector<8x128xi1>
    %71 = vector.broadcast %cst_35 : f32 to vector<8x128xf32>
    %72 = arith.select %70, %65, %71 : vector<8x128xi1>, vector<8x128xf32>
    %73 = arith.index_cast %c2_i32 : i32 to index
    %c0_36 = arith.constant 0 : index
    %c0_37 = arith.constant 0 : index
    %74 = vector.load %arg6[%73, %c0_36, %c0_37] : memref<8x8x128xf32, #tpu.memory_space<vmem>>, vector<1x8x128xf32>
    %75 = vector.shape_cast %74 : vector<1x8x128xf32> to vector<8x128xf32>
    %76 = vector.shape_cast %72 : vector<8x128xf32> to vector<1x8x128xf32>
    tpu.vector_store %arg6[%73, %c0_36, %c0_37], %76 {strides = array<i32>} : memref<8x8x128xf32, #tpu.memory_space<vmem>>, vector<1x8x128xf32>,
    %77 = vector.shape_cast %68 : vector<8x1xi1> to vector<8x1xi1>
    %78 = vector.broadcast %77 : vector<8x1xi1> to vector<8x128xi1>
    %79 = arith.select %78, %65, %59 : vector<8x128xi1>, vector<8x128xf32>
    %c0_38 = arith.constant 0 : index
    %c0_39 = arith.constant 0 : index
    %80 = vector.load %arg7[%c0_38, %c0_39] : memref<8x128xf32, #tpu.memory_space<vmem>>, vector<8x128xf32>
    tpu.vector_store %arg7[%c0_38, %c0_39], %79 {strides = array<i32>} : memref<8x128xf32, #tpu.memory_space<vmem>>, vector<8x128xf32>,
    %c3_i32 = arith.constant 3 : i32
    %81 = arith.index_cast %c3_i32 : i32 to index
    %c0_40 = arith.constant 0 : index
    %c0_41 = arith.constant 0 : index
    %82 = vector.load %arg2[%81, %c0_40, %c0_41] : memref<8x8x128xf32, #tpu.memory_space<vmem>>, vector<1x8x128xf32>
    %83 = vector.shape_cast %82 : vector<1x8x128xf32> to vector<8x128xf32>
    %c0_42 = arith.constant 0 : index
    %c0_43 = arith.constant 0 : index
    %84 = vector.load %arg7[%c0_42, %c0_43] : memref<8x128xf32, #tpu.memory_space<vmem>>, vector<8x128xf32>
    %85 = tpu.concatenate %83, %84 in 1 : vector<8x128xf32>, vector<8x128xf32> -> vector<8x256xf32>
    %c0_44 = arith.constant 0 : index
    %c0_45 = arith.constant 0 : index
    %86 = vector.load %arg3[%c0_44, %c0_45] : memref<256x128xf32, #tpu.memory_space<vmem>>, vector<256x128xf32>
    %cst_46 = arith.constant dense<0.000000e+00> : vector<8x128xf32>
    %87 = tpu.matmul %85, %86, %cst_46 {dimension_numbers = #tpu.dot_dimension_numbers<[1], [0], [0], [1], [0, 0, 1, 1], [], []>} : vector<8x256xf32>, vector<256x128xf32>, vector<8x128xf32> -> vector<8x128xf32>
    %88 = vector.broadcast %3 : vector<1x128xf32> to vector<8x128xf32>
    %89 = arith.addf %87, %88 : vector<8x128xf32>
    %90 = math.tanh %89 : vector<8x128xf32>
    %91 = arith.addi %5, %c3_i32 : i32
    %92 = vector.broadcast %91 : i32 to vector<8x1xi32>
    %93 = arith.cmpi slt, %92, %4 : vector<8x1xi32>
    %cst_47 = arith.constant 0.000000e+00 : f32
    %94 = vector.shape_cast %93 : vector<8x1xi1> to vector<8x1xi1>
    %95 = vector.broadcast %94 : vector<8x1xi1> to vector<8x128xi1>
    %96 = vector.broadcast %cst_47 : f32 to vector<8x128xf32>
    %97 = arith.select %95, %90, %96 : vector<8x128xi1>, vector<8x128xf32>
    %98 = arith.index_cast %c3_i32 : i32 to index
    %c0_48 = arith.constant 0 : index
    %c0_49 = arith.constant 0 : index
    %99 = vector.load %arg6[%98, %c0_48, %c0_49] : memref<8x8x128xf32, #tpu.memory_space<vmem>>, vector<1x8x128xf32>
    %100 = vector.shape_cast %99 : vector<1x8x128xf32> to vector<8x128xf32>
    %101 = vector.shape_cast %97 : vector<8x128xf32> to vector<1x8x128xf32>
    tpu.vector_store %arg6[%98, %c0_48, %c0_49], %101 {strides = array<i32>} : memref<8x8x128xf32, #tpu.memory_space<vmem>>, vector<1x8x128xf32>,
    %102 = vector.shape_cast %93 : vector<8x1xi1> to vector<8x1xi1>
    %103 = vector.broadcast %102 : vector<8x1xi1> to vector<8x128xi1>
    %104 = arith.select %103, %90, %84 : vector<8x128xi1>, vector<8x128xf32>
    %c0_50 = arith.constant 0 : index
    %c0_51 = arith.constant 0 : index
    %105 = vector.load %arg7[%c0_50, %c0_51] : memref<8x128xf32, #tpu.memory_space<vmem>>, vector<8x128xf32>
    tpu.vector_store %arg7[%c0_50, %c0_51], %104 {strides = array<i32>} : memref<8x128xf32, #tpu.memory_space<vmem>>, vector<8x128xf32>,
    %c4_i32 = arith.constant 4 : i32
    %106 = arith.index_cast %c4_i32 : i32 to index
    %c0_52 = arith.constant 0 : index
    %c0_53 = arith.constant 0 : index
    %107 = vector.load %arg2[%106, %c0_52, %c0_53] : memref<8x8x128xf32, #tpu.memory_space<vmem>>, vector<1x8x128xf32>
    %108 = vector.shape_cast %107 : vector<1x8x128xf32> to vector<8x128xf32>
    %c0_54 = arith.constant 0 : index
    %c0_55 = arith.constant 0 : index
    %109 = vector.load %arg7[%c0_54, %c0_55] : memref<8x128xf32, #tpu.memory_space<vmem>>, vector<8x128xf32>
    %110 = tpu.concatenate %108, %109 in 1 : vector<8x128xf32>, vector<8x128xf32> -> vector<8x256xf32>
    %c0_56 = arith.constant 0 : index
    %c0_57 = arith.constant 0 : index
    %111 = vector.load %arg3[%c0_56, %c0_57] : memref<256x128xf32, #tpu.memory_space<vmem>>, vector<256x128xf32>
    %cst_58 = arith.constant dense<0.000000e+00> : vector<8x128xf32>
    %112 = tpu.matmul %110, %111, %cst_58 {dimension_numbers = #tpu.dot_dimension_numbers<[1], [0], [0], [1], [0, 0, 1, 1], [], []>} : vector<8x256xf32>, vector<256x128xf32>, vector<8x128xf32> -> vector<8x128xf32>
    %113 = vector.broadcast %3 : vector<1x128xf32> to vector<8x128xf32>
    %114 = arith.addf %112, %113 : vector<8x128xf32>
    %115 = math.tanh %114 : vector<8x128xf32>
    %116 = arith.addi %5, %c4_i32 : i32
    %117 = vector.broadcast %116 : i32 to vector<8x1xi32>
    %118 = arith.cmpi slt, %117, %4 : vector<8x1xi32>
    %cst_59 = arith.constant 0.000000e+00 : f32
    %119 = vector.shape_cast %118 : vector<8x1xi1> to vector<8x1xi1>
    %120 = vector.broadcast %119 : vector<8x1xi1> to vector<8x128xi1>
    %121 = vector.broadcast %cst_59 : f32 to vector<8x128xf32>
    %122 = arith.select %120, %115, %121 : vector<8x128xi1>, vector<8x128xf32>
    %123 = arith.index_cast %c4_i32 : i32 to index
    %c0_60 = arith.constant 0 : index
    %c0_61 = arith.constant 0 : index
    %124 = vector.load %arg6[%123, %c0_60, %c0_61] : memref<8x8x128xf32, #tpu.memory_space<vmem>>, vector<1x8x128xf32>
    %125 = vector.shape_cast %124 : vector<1x8x128xf32> to vector<8x128xf32>
    %126 = vector.shape_cast %122 : vector<8x128xf32> to vector<1x8x128xf32>
    tpu.vector_store %arg6[%123, %c0_60, %c0_61], %126 {strides = array<i32>} : memref<8x8x128xf32, #tpu.memory_space<vmem>>, vector<1x8x128xf32>,
    %127 = vector.shape_cast %118 : vector<8x1xi1> to vector<8x1xi1>
    %128 = vector.broadcast %127 : vector<8x1xi1> to vector<8x128xi1>
    %129 = arith.select %128, %115, %109 : vector<8x128xi1>, vector<8x128xf32>
    %c0_62 = arith.constant 0 : index
    %c0_63 = arith.constant 0 : index
    %130 = vector.load %arg7[%c0_62, %c0_63] : memref<8x128xf32, #tpu.memory_space<vmem>>, vector<8x128xf32>
    tpu.vector_store %arg7[%c0_62, %c0_63], %129 {strides = array<i32>} : memref<8x128xf32, #tpu.memory_space<vmem>>, vector<8x128xf32>,
    %c5_i32 = arith.constant 5 : i32
    %131 = arith.index_cast %c5_i32 : i32 to index
    %c0_64 = arith.constant 0 : index
    %c0_65 = arith.constant 0 : index
    %132 = vector.load %arg2[%131, %c0_64, %c0_65] : memref<8x8x128xf32, #tpu.memory_space<vmem>>, vector<1x8x128xf32>
    %133 = vector.shape_cast %132 : vector<1x8x128xf32> to vector<8x128xf32>
    %c0_66 = arith.constant 0 : index
    %c0_67 = arith.constant 0 : index
    %134 = vector.load %arg7[%c0_66, %c0_67] : memref<8x128xf32, #tpu.memory_space<vmem>>, vector<8x128xf32>
    %135 = tpu.concatenate %133, %134 in 1 : vector<8x128xf32>, vector<8x128xf32> -> vector<8x256xf32>
    %c0_68 = arith.constant 0 : index
    %c0_69 = arith.constant 0 : index
    %136 = vector.load %arg3[%c0_68, %c0_69] : memref<256x128xf32, #tpu.memory_space<vmem>>, vector<256x128xf32>
    %cst_70 = arith.constant dense<0.000000e+00> : vector<8x128xf32>
    %137 = tpu.matmul %135, %136, %cst_70 {dimension_numbers = #tpu.dot_dimension_numbers<[1], [0], [0], [1], [0, 0, 1, 1], [], []>} : vector<8x256xf32>, vector<256x128xf32>, vector<8x128xf32> -> vector<8x128xf32>
    %138 = vector.broadcast %3 : vector<1x128xf32> to vector<8x128xf32>
    %139 = arith.addf %137, %138 : vector<8x128xf32>
    %140 = math.tanh %139 : vector<8x128xf32>
    %141 = arith.addi %5, %c5_i32 : i32
    %142 = vector.broadcast %141 : i32 to vector<8x1xi32>
    %143 = arith.cmpi slt, %142, %4 : vector<8x1xi32>
    %cst_71 = arith.constant 0.000000e+00 : f32
    %144 = vector.shape_cast %143 : vector<8x1xi1> to vector<8x1xi1>
    %145 = vector.broadcast %144 : vector<8x1xi1> to vector<8x128xi1>
    %146 = vector.broadcast %cst_71 : f32 to vector<8x128xf32>
    %147 = arith.select %145, %140, %146 : vector<8x128xi1>, vector<8x128xf32>
    %148 = arith.index_cast %c5_i32 : i32 to index
    %c0_72 = arith.constant 0 : index
    %c0_73 = arith.constant 0 : index
    %149 = vector.load %arg6[%148, %c0_72, %c0_73] : memref<8x8x128xf32, #tpu.memory_space<vmem>>, vector<1x8x128xf32>
    %150 = vector.shape_cast %149 : vector<1x8x128xf32> to vector<8x128xf32>
    %151 = vector.shape_cast %147 : vector<8x128xf32> to vector<1x8x128xf32>
    tpu.vector_store %arg6[%148, %c0_72, %c0_73], %151 {strides = array<i32>} : memref<8x8x128xf32, #tpu.memory_space<vmem>>, vector<1x8x128xf32>,
    %152 = vector.shape_cast %143 : vector<8x1xi1> to vector<8x1xi1>
    %153 = vector.broadcast %152 : vector<8x1xi1> to vector<8x128xi1>
    %154 = arith.select %153, %140, %134 : vector<8x128xi1>, vector<8x128xf32>
    %c0_74 = arith.constant 0 : index
    %c0_75 = arith.constant 0 : index
    %155 = vector.load %arg7[%c0_74, %c0_75] : memref<8x128xf32, #tpu.memory_space<vmem>>, vector<8x128xf32>
    tpu.vector_store %arg7[%c0_74, %c0_75], %154 {strides = array<i32>} : memref<8x128xf32, #tpu.memory_space<vmem>>, vector<8x128xf32>,
    %c6_i32 = arith.constant 6 : i32
    %156 = arith.index_cast %c6_i32 : i32 to index
    %c0_76 = arith.constant 0 : index
    %c0_77 = arith.constant 0 : index
    %157 = vector.load %arg2[%156, %c0_76, %c0_77] : memref<8x8x128xf32, #tpu.memory_space<vmem>>, vector<1x8x128xf32>
    %158 = vector.shape_cast %157 : vector<1x8x128xf32> to vector<8x128xf32>
    %c0_78 = arith.constant 0 : index
    %c0_79 = arith.constant 0 : index
    %159 = vector.load %arg7[%c0_78, %c0_79] : memref<8x128xf32, #tpu.memory_space<vmem>>, vector<8x128xf32>
    %160 = tpu.concatenate %158, %159 in 1 : vector<8x128xf32>, vector<8x128xf32> -> vector<8x256xf32>
    %c0_80 = arith.constant 0 : index
    %c0_81 = arith.constant 0 : index
    %161 = vector.load %arg3[%c0_80, %c0_81] : memref<256x128xf32, #tpu.memory_space<vmem>>, vector<256x128xf32>
    %cst_82 = arith.constant dense<0.000000e+00> : vector<8x128xf32>
    %162 = tpu.matmul %160, %161, %cst_82 {dimension_numbers = #tpu.dot_dimension_numbers<[1], [0], [0], [1], [0, 0, 1, 1], [], []>} : vector<8x256xf32>, vector<256x128xf32>, vector<8x128xf32> -> vector<8x128xf32>
    %163 = vector.broadcast %3 : vector<1x128xf32> to vector<8x128xf32>
    %164 = arith.addf %162, %163 : vector<8x128xf32>
    %165 = math.tanh %164 : vector<8x128xf32>
    %166 = arith.addi %5, %c6_i32 : i32
    %167 = vector.broadcast %166 : i32 to vector<8x1xi32>
    %168 = arith.cmpi slt, %167, %4 : vector<8x1xi32>
    %cst_83 = arith.constant 0.000000e+00 : f32
    %169 = vector.shape_cast %168 : vector<8x1xi1> to vector<8x1xi1>
    %170 = vector.broadcast %169 : vector<8x1xi1> to vector<8x128xi1>
    %171 = vector.broadcast %cst_83 : f32 to vector<8x128xf32>
    %172 = arith.select %170, %165, %171 : vector<8x128xi1>, vector<8x128xf32>
    %173 = arith.index_cast %c6_i32 : i32 to index
    %c0_84 = arith.constant 0 : index
    %c0_85 = arith.constant 0 : index
    %174 = vector.load %arg6[%173, %c0_84, %c0_85] : memref<8x8x128xf32, #tpu.memory_space<vmem>>, vector<1x8x128xf32>
    %175 = vector.shape_cast %174 : vector<1x8x128xf32> to vector<8x128xf32>
    %176 = vector.shape_cast %172 : vector<8x128xf32> to vector<1x8x128xf32>
    tpu.vector_store %arg6[%173, %c0_84, %c0_85], %176 {strides = array<i32>} : memref<8x8x128xf32, #tpu.memory_space<vmem>>, vector<1x8x128xf32>,
    %177 = vector.shape_cast %168 : vector<8x1xi1> to vector<8x1xi1>
    %178 = vector.broadcast %177 : vector<8x1xi1> to vector<8x128xi1>
    %179 = arith.select %178, %165, %159 : vector<8x128xi1>, vector<8x128xf32>
    %c0_86 = arith.constant 0 : index
    %c0_87 = arith.constant 0 : index
    %180 = vector.load %arg7[%c0_86, %c0_87] : memref<8x128xf32, #tpu.memory_space<vmem>>, vector<8x128xf32>
    tpu.vector_store %arg7[%c0_86, %c0_87], %179 {strides = array<i32>} : memref<8x128xf32, #tpu.memory_space<vmem>>, vector<8x128xf32>,
    %c7_i32 = arith.constant 7 : i32
    %181 = arith.index_cast %c7_i32 : i32 to index
    %c0_88 = arith.constant 0 : index
    %c0_89 = arith.constant 0 : index
    %182 = vector.load %arg2[%181, %c0_88, %c0_89] : memref<8x8x128xf32, #tpu.memory_space<vmem>>, vector<1x8x128xf32>
    %183 = vector.shape_cast %182 : vector<1x8x128xf32> to vector<8x128xf32>
    %c0_90 = arith.constant 0 : index
    %c0_91 = arith.constant 0 : index
    %184 = vector.load %arg7[%c0_90, %c0_91] : memref<8x128xf32, #tpu.memory_space<vmem>>, vector<8x128xf32>
    %185 = tpu.concatenate %183, %184 in 1 : vector<8x128xf32>, vector<8x128xf32> -> vector<8x256xf32>
    %c0_92 = arith.constant 0 : index
    %c0_93 = arith.constant 0 : index
    %186 = vector.load %arg3[%c0_92, %c0_93] : memref<256x128xf32, #tpu.memory_space<vmem>>, vector<256x128xf32>
    %cst_94 = arith.constant dense<0.000000e+00> : vector<8x128xf32>
    %187 = tpu.matmul %185, %186, %cst_94 {dimension_numbers = #tpu.dot_dimension_numbers<[1], [0], [0], [1], [0, 0, 1, 1], [], []>} : vector<8x256xf32>, vector<256x128xf32>, vector<8x128xf32> -> vector<8x128xf32>
    %188 = vector.broadcast %3 : vector<1x128xf32> to vector<8x128xf32>
    %189 = arith.addf %187, %188 : vector<8x128xf32>
    %190 = math.tanh %189 : vector<8x128xf32>
    %191 = arith.addi %5, %c7_i32 : i32
    %192 = vector.broadcast %191 : i32 to vector<8x1xi32>
    %193 = arith.cmpi slt, %192, %4 : vector<8x1xi32>
    %cst_95 = arith.constant 0.000000e+00 : f32
    %194 = vector.shape_cast %193 : vector<8x1xi1> to vector<8x1xi1>
    %195 = vector.broadcast %194 : vector<8x1xi1> to vector<8x128xi1>
    %196 = vector.broadcast %cst_95 : f32 to vector<8x128xf32>
    %197 = arith.select %195, %190, %196 : vector<8x128xi1>, vector<8x128xf32>
    %198 = arith.index_cast %c7_i32 : i32 to index
    %c0_96 = arith.constant 0 : index
    %c0_97 = arith.constant 0 : index
    %199 = vector.load %arg6[%198, %c0_96, %c0_97] : memref<8x8x128xf32, #tpu.memory_space<vmem>>, vector<1x8x128xf32>
    %200 = vector.shape_cast %199 : vector<1x8x128xf32> to vector<8x128xf32>
    %201 = vector.shape_cast %197 : vector<8x128xf32> to vector<1x8x128xf32>
    tpu.vector_store %arg6[%198, %c0_96, %c0_97], %201 {strides = array<i32>} : memref<8x8x128xf32, #tpu.memory_space<vmem>>, vector<1x8x128xf32>,
    %202 = vector.shape_cast %193 : vector<8x1xi1> to vector<8x1xi1>
    %203 = vector.broadcast %202 : vector<8x1xi1> to vector<8x128xi1>
    %204 = arith.select %203, %190, %184 : vector<8x128xi1>, vector<8x128xf32>
    %c0_98 = arith.constant 0 : index
    %c0_99 = arith.constant 0 : index
    %205 = vector.load %arg7[%c0_98, %c0_99] : memref<8x128xf32, #tpu.memory_space<vmem>>, vector<8x128xf32>
    tpu.vector_store %arg7[%c0_98, %c0_99], %204 {strides = array<i32>} : memref<8x128xf32, #tpu.memory_space<vmem>>, vector<8x128xf32>,
    %c8_i32_100 = arith.constant 8 : i32
    return
  }
  func.func @transform_0(%arg0: i32, %arg1: i32) -> (i32, i32, i32) {
    %c0_i32 = arith.constant 0 : i32
    %c0_i32_0 = arith.constant 0 : i32
    return %arg1, %arg0, %c0_i32 : i32, i32, i32
  }
  func.func @transform_1(%arg0: i32, %arg1: i32) -> (i32, i32) {
    %c0_i32 = arith.constant 0 : i32
    %c0_i32_0 = arith.constant 0 : i32
    %c0_i32_1 = arith.constant 0 : i32
    return %c0_i32, %c0_i32_0 : i32, i32
  }
  func.func @transform_2(%arg0: i32, %arg1: i32) -> (i32, i32) {
    %c0_i32 = arith.constant 0 : i32
    %c0_i32_0 = arith.constant 0 : i32
    %c0_i32_1 = arith.constant 0 : i32
    return %c0_i32, %c0_i32_0 : i32, i32
  }
  func.func @transform_3(%arg0: i32, %arg1: i32) -> (i32, i32) {
    %c0_i32 = arith.constant 0 : i32
    %c0_i32_0 = arith.constant 0 : i32
    return %arg0, %c0_i32 : i32, i32
  }
  func.func @transform_4(%arg0: i32, %arg1: i32) -> (i32, i32, i32) {
    %c0_i32 = arith.constant 0 : i32
    %c0_i32_0 = arith.constant 0 : i32
    return %arg1, %arg0, %c0_i32 : i32, i32, i32
  }
}

</mosaic_0001>

<llo_original>
// kernel: tpu_custom_call.1
$region0: #{tpu_custom_call.1}
  #allocation0 [shape = 'u32[]', space=smem, size = 0x4, offset = 0x4, fixed_abs, tag = 'smem constant byte address 0x4 - core index']
  #allocation1 [shape = 'u32[144,128]{1,0:T(1,128)}', space=vmem, size = 0x12000, scoped, tag = 'internal scratch']
  #allocation2 [shape = 'f32[8,128]{1,0:T(8,128)}', space=vmem, size = 0x1000, scoped, tag = 'scratch operand']
  %s0 = inlined_call_operand.hbm [shape: f32[8,8,128], index: 0, kind: input, shape index: {}]
  %s1 = inlined_call_operand.hbm [shape: f32[256,128], index: 1, kind: input, shape index: {}]
  %s2 = inlined_call_operand.vmem [shape: f32[1,128], index: 2, kind: input, shape index: {}]
  %s3 = inlined_call_operand.vmem [shape: s32[8,1], index: 3, kind: input, shape index: {}]
  %s4 = inlined_call_operand.hbm [shape: f32[8,8,128], index: 4, kind: output, shape index: {}]
  %s5 = sld [smem:[#allocation0]]
  $region38: #{tpu_custom_call.1} parent=0
    _
  %s7 = ssub.s32 1, %s5
  %s8 = scalar_select 0, %s7, %s5
  $region1: #{tpu_custom_call.1} parent=0
    #allocation3 [shape = 'u8[32768]{0}', space=vmem, size = 0x8000, scoped, tag = 'input window, operand 0, single buffered']
    #allocation4 [shape = 's32[1]{0}', space=sflag, size = 0x4, scoped, tag = 'scoped memory for tpu_custom_call.1']
    #allocation5 [shape = 's32[1]{0}', space=sflag, size = 0x4, scoped, tag = 'scoped memory for tpu_custom_call.1']
    #allocation6 [shape = 'u8[131072]{0}', space=vmem, size = 0x20000, scoped, tag = 'input window, operand 1, single buffered']
    #allocation7 [shape = 's32[1]{0}', space=sflag, size = 0x4, scoped, tag = 'scoped memory for tpu_custom_call.1']
    #allocation8 [shape = 'u8[32768]{0}', space=vmem, size = 0x8000, scoped, tag = 'output window, operand 0, single buffered']
    %9 = vsyncpa [#allocation4], 0
    %10 = vsyncpa [#allocation7], 0
    %11 = vsyncpa [#allocation5], 0
    // Predicated region
    $region2: #{tpu_custom_call.1} parent=1 // pred_check
      _
    $region3: #{tpu_custom_call.1} parent=1 // pred_check_branch
      %13 = sbr.rel (0) target = $region5
    $region4: #{tpu_custom_call.1} parent=1 // pred_region
      %s15 = ssub.s32 1024, 1024
      %16 = vsyncadd [#allocation4], %s15
      %s17 = sshll.u32 [#allocation3], 4
      %s18 = int_to_ptr.vmem [resolvable:$true] %s17
      %23 = dma.hbm_to_vmem [thread:$0]  %s0, 1024, %s18, [#allocation4], 128, 128, 8
    $region5: #{tpu_custom_call.1} parent=1 // pred_fallthru
      _
    // Predicated region
    $region6: #{tpu_custom_call.1} parent=1 // pred_check
      _
    $region7: #{tpu_custom_call.1} parent=1 // pred_check_branch
      %25 = sbr.rel (0) target = $region9
    $region8: #{tpu_custom_call.1} parent=1 // pred_region
      %s27 = ssub.s32 4096, 4096
      %28 = vsyncadd [#allocation7], %s27
      %s29 = sshll.u32 [#allocation6], 4
      %s30 = int_to_ptr.vmem [resolvable:$true] %s29
      %35 = dma.hbm_to_vmem [thread:$0]  %s1, 4096, %s30, [#allocation7], 128, 128, 8
    $region9: #{tpu_custom_call.1} parent=1 // pred_fallthru
      _
    // Predicated region
    $region10: #{tpu_custom_call.1} parent=1 // pred_check
      _
    $region11: #{tpu_custom_call.1} parent=1 // pred_check_branch
      %37 = sbr.rel (0) target = $region13
    $region12: #{tpu_custom_call.1} parent=1 // pred_region
      _
    $region13: #{tpu_custom_call.1} parent=1 // pred_fallthru
      _
    // Predicated region
    $region14: #{tpu_custom_call.1} parent=1 // pred_check
      _
    $region15: #{tpu_custom_call.1} parent=1 // pred_check_branch
      %39 = sbr.rel (0) target = $region17
    $region16: #{tpu_custom_call.1} parent=1 // pred_region
      _
    $region17: #{tpu_custom_call.1} parent=1 // pred_fallthru
      _
    // Predicated region
    $region18: #{tpu_custom_call.1} parent=1 // pred_check
      _
    $region19: #{tpu_custom_call.1} parent=1 // pred_check_branch
      %41 = sbr.rel (0) target = $region21
    $region20: #{tpu_custom_call.1} parent=1 // pred_region
      %42 = dma.done [#allocation4], 1024
    $region21: #{tpu_custom_call.1} parent=1 // pred_fallthru
      _
    // Predicated region
    $region22: #{tpu_custom_call.1} parent=1 // pred_check
      _
    $region23: #{tpu_custom_call.1} parent=1 // pred_check_branch
      %44 = sbr.rel (0) target = $region25
    $region24: #{tpu_custom_call.1} parent=1 // pred_region
      %45 = dma.done [#allocation7], 4096
    $region25: #{tpu_custom_call.1} parent=1 // pred_fallthru
      _
    %p46 = scmp.eq.s32.totalorder 0, 0
    // Predicated region
    $region26: #{tpu_custom_call.1} parent=1 // pred_check
      %p47 = pneg %p46
    $region27: #{tpu_custom_call.1} parent=1 // pred_check_branch
      %49 = sbr.rel (%p47) target = $region29
    $region28: #{tpu_custom_call.1} parent=1 // pred_region
      %50 = vst [vmem:[#allocation2] sm:$0xff] 0.0
    $region29: #{tpu_custom_call.1} parent=1 // pred_fallthru
      _
    %v51 = vld [vmem:[%s2] sm:$0x1]
    %v52 = vld [vmem:[%s3] sm:$0xff]
    %s53 = smul.u32 0, 8
    %v54 = vld [vmem:[#allocation3] sm:$0xff]
    %v55 = vld [vmem:[#allocation2] sm:$0xff]
    %v56 = vld [vmem:[#allocation6] sm:$0xff]
    %v57 = vld [vmem:[#allocation6 + $0x8] sm:$0xff]
    %v58 = vld [vmem:[#allocation6 + $0x10] sm:$0xff]
    %v59 = vld [vmem:[#allocation6 + $0x18] sm:$0xff]
    %v60 = vld [vmem:[#allocation6 + $0x20] sm:$0xff]
    %v61 = vld [vmem:[#allocation6 + $0x28] sm:$0xff]
    %v62 = vld [vmem:[#allocation6 + $0x30] sm:$0xff]
    %v63 = vld [vmem:[#allocation6 + $0x38] sm:$0xff]
    %v64 = vld [vmem:[#allocation6 + $0x40] sm:$0xff]
    %v65 = vld [vmem:[#allocation6 + $0x48] sm:$0xff]
    %v66 = vld [vmem:[#allocation6 + $0x50] sm:$0xff]
    %v67 = vld [vmem:[#allocation6 + $0x58] sm:$0xff]
    %v68 = vld [vmem:[#allocation6 + $0x60] sm:$0xff]
    %v69 = vld [vmem:[#allocation6 + $0x68] sm:$0xff]
    %v70 = vld [vmem:[#allocation6 + $0x70] sm:$0xff]
    %v71 = vld [vmem:[#allocation6 + $0x78] sm:$0xff]
    %v72 = vld [vmem:[#allocation6 + $0x80] sm:$0xff]
    %v73 = vld [vmem:[#allocation6 + $0x88] sm:$0xff]
    %v74 = vld [vmem:[#allocation6 + $0x90] sm:$0xff]
    %v75 = vld [vmem:[#allocation6 + $0x98] sm:$0xff]
    %v76 = vld [vmem:[#allocation6 + $0xa0] sm:$0xff]
    %v77 = vld [vmem:[#allocation6 + $0xa8] sm:$0xff]
    %v78 = vld [vmem:[#allocation6 + $0xb0] sm:$0xff]
    %v79 = vld [vmem:[#allocation6 + $0xb8] sm:$0xff]
    %v80 = vld [vmem:[#allocation6 + $0xc0] sm:$0xff]
    %v81 = vld [vmem:[#allocation6 + $0xc8] sm:$0xff]
    %v82 = vld [vmem:[#allocation6 + $0xd0] sm:$0xff]
    %v83 = vld [vmem:[#allocation6 + $0xd8] sm:$0xff]
    %v84 = vld [vmem:[#allocation6 + $0xe0] sm:$0xff]
    %v85 = vld [vmem:[#allocation6 + $0xe8] sm:$0xff]
    %v86 = vld [vmem:[#allocation6 + $0xf0] sm:$0xff]
    %v87 = vld [vmem:[#allocation6 + $0xf8] sm:$0xff]
    %v89 = vlaneseq
    %v90 = vshrl.u32 %v89, 7
    %v91 = vsub.s32 0, %v90
    %v92 = vrot.slane %v51, %v91
    %94 = vmatprep.subr.mxu0 0.0
    %95 = vmatpush1.msra.mxu0 %v56
    %96 = vmatprep.subr.mxu0 0.0
    %97 = vmatpush1.msra.mxu0 %v57
    %98 = vmatprep.subr.mxu0 0.0
    %99 = vmatpush1.msra.mxu0 %v58
    %100 = vmatprep.subr.mxu0 0.0
    %101 = vmatpush1.msra.mxu0 %v59
    %102 = vmatprep.subr.mxu0 0.0
    %103 = vmatpush1.msra.mxu0 %v60
    %104 = vmatprep.subr.mxu0 0.0
    %105 = vmatpush1.msra.mxu0 %v61
    %106 = vmatprep.subr.mxu0 0.0
    %107 = vmatpush1.msra.mxu0 %v62
    %108 = vmatprep.subr.mxu0 0.0
    %109 = vmatpush1.msra.mxu0 %v63
    %110 = vmatprep.subr.mxu0 0.0
    %111 = vmatpush1.msra.mxu0 %v64
    %112 = vmatprep.subr.mxu0 0.0
    %113 = vmatpush1.msra.mxu0 %v65
    %114 = vmatprep.subr.mxu0 0.0
    %115 = vmatpush1.msra.mxu0 %v66
    %116 = vmatprep.subr.mxu0 0.0
    %117 = vmatpush1.msra.mxu0 %v67
    %118 = vmatprep.subr.mxu0 0.0
    %119 = vmatpush1.msra.mxu0 %v68
    %120 = vmatprep.subr.mxu0 0.0
    %121 = vmatpush1.msra.mxu0 %v69
    %122 = vmatprep.subr.mxu0 0.0
    %123 = vmatpush1.msra.mxu0 %v70
    %124 = vmatprep.subr.mxu0 0.0
    %125 = vmatpush1.msra.mxu0 %v71
    %126 = vmatprep.subr.mxu0 0.0
    %127 = vmatpush1.msra.mxu0 %v72
    %128 = vmatprep.subr.mxu0 0.0
    %129 = vmatpush1.msra.mxu0 %v73
    %130 = vmatprep.subr.mxu0 0.0
    %131 = vmatpush1.msra.mxu0 %v74
    %132 = vmatprep.subr.mxu0 0.0
    %133 = vmatpush1.msra.mxu0 %v75
    %134 = vmatprep.subr.mxu0 0.0
    %135 = vmatpush1.msra.mxu0 %v76
    %136 = vmatprep.subr.mxu0 0.0
    %137 = vmatpush1.msra.mxu0 %v77
    %138 = vmatprep.subr.mxu0 0.0
    %139 = vmatpush1.msra.mxu0 %v78
    %140 = vmatprep.subr.mxu0 0.0
    %141 = vmatpush1.msra.mxu0 %v79
    %142 = vmatprep.subr.mxu0 0.0
    %143 = vmatpush1.msra.mxu0 %v80
    %144 = vmatprep.subr.mxu0 0.0
    %145 = vmatpush1.msra.mxu0 %v81
    %146 = vmatprep.subr.mxu0 0.0
    %147 = vmatpush1.msra.mxu0 %v82
    %148 = vmatprep.subr.mxu0 0.0
    %149 = vmatpush1.msra.mxu0 %v83
    %150 = vmatprep.subr.mxu0 0.0
    %151 = vmatpush1.msra.mxu0 %v84
    %152 = vmatprep.subr.mxu0 0.0
    %153 = vmatpush1.msra.mxu0 %v85
    %154 = vmatprep.subr.mxu0 0.0
    %155 = vmatpush1.msra.mxu0 %v86
    %156 = vmatprep.subr.mxu0 0.0
    %157 = vmatpush1.msra.mxu0 %v87
    %158 = vmatprep.mubr.f32.mxu0 %v55
    %159 = vmatmul.mubr.f32.gmra.mrb[0].mxu0 %v54
    %v160 = vpop.f32.mrb[0].mxu0
    %v161 = vadd.f32 %v92, %v160
    %v162 = vpop.f32.mrb[0].mxu0
    %163 = vdwg.mxu0
    %v164 = vtanh.pop %v161
    %v165 = vstv %s53
    %vm166 = vcmp.lt.s32.totalorder %v165, %v52
    %v167 = vsel %vm166, 1, 0
    %168 = vset.pattern.permute.xlu0 0
    %169 = vperm.xlu0 %168, %v167
    %v170 = vpop.permute.xlu0 %169
    %vm171 = vcmp.eq.s32.totalorder %v170, 1
    %v172 = vsel %vm171, %v164, 0.0
    %173 = vst [vmem:[#allocation8] sm:$0xff] %v172
    %v174 = vsel %vm171, %v164, %v55
    %175 = vst [vmem:[#allocation2] sm:$0xff] %v174
    %s176 = scalar_lea.vmem [#allocation3], 8
    %v177 = vld [vmem:[%s176] sm:$0xff]
    %v178 = vld [vmem:[#allocation2] sm:$0xff]
    %v179 = vld [vmem:[#allocation6] sm:$0xff]
    %v180 = vld [vmem:[#allocation6 + $0x8] sm:$0xff]
    %v181 = vld [vmem:[#allocation6 + $0x10] sm:$0xff]
    %v182 = vld [vmem:[#allocation6 + $0x18] sm:$0xff]
    %v183 = vld [vmem:[#allocation6 + $0x20] sm:$0xff]
    %v184 = vld [vmem:[#allocation6 + $0x28] sm:$0xff]
    %v185 = vld [vmem:[#allocation6 + $0x30] sm:$0xff]
    %v186 = vld [vmem:[#allocation6 + $0x38] sm:$0xff]
    %v187 = vld [vmem:[#allocation6 + $0x40] sm:$0xff]
    %v188 = vld [vmem:[#allocation6 + $0x48] sm:$0xff]
    %v189 = vld [vmem:[#allocation6 + $0x50] sm:$0xff]
    %v190 = vld [vmem:[#allocation6 + $0x58] sm:$0xff]
    %v191 = vld [vmem:[#allocation6 + $0x60] sm:$0xff]
    %v192 = vld [vmem:[#allocation6 + $0x68] sm:$0xff]
    %v193 = vld [vmem:[#allocation6 + $0x70] sm:$0xff]
    %v194 = vld [vmem:[#allocation6 + $0x78] sm:$0xff]
    %v195 = vld [vmem:[#allocation6 + $0x80] sm:$0xff]
    %v196 = vld [vmem:[#allocation6 + $0x88] sm:$0xff]
    %v197 = vld [vmem:[#allocation6 + $0x90] sm:$0xff]
    %v198 = vld [vmem:[#allocation6 + $0x98] sm:$0xff]
    %v199 = vld [vmem:[#allocation6 + $0xa0] sm:$0xff]
    %v200 = vld [vmem:[#allocation6 + $0xa8] sm:$0xff]
    %v201 = vld [vmem:[#allocation6 + $0xb0] sm:$0xff]
    %v202 = vld [vmem:[#allocation6 + $0xb8] sm:$0xff]
    %v203 = vld [vmem:[#allocation6 + $0xc0] sm:$0xff]
    %v204 = vld [vmem:[#allocation6 + $0xc8] sm:$0xff]
    %v205 = vld [vmem:[#allocation6 + $0xd0] sm:$0xff]
    %v206 = vld [vmem:[#allocation6 + $0xd8] sm:$0xff]
    %v207 = vld [vmem:[#allocation6 + $0xe0] sm:$0xff]
    %v208 = vld [vmem:[#allocation6 + $0xe8] sm:$0xff]
    %v209 = vld [vmem:[#allocation6 + $0xf0] sm:$0xff]
    %v210 = vld [vmem:[#allocation6 + $0xf8] sm:$0xff]
    %211 = vmatprep.subr.mxu0 0.0
    %212 = vmatpush1.msra.mxu0 %v179
    %213 = vmatprep.subr.mxu0 0.0
    %214 = vmatpush1.msra.mxu0 %v180
    %215 = vmatprep.subr.mxu0 0.0
    %216 = vmatpush1.msra.mxu0 %v181
    %217 = vmatprep.subr.mxu0 0.0
    %218 = vmatpush1.msra.mxu0 %v182
    %219 = vmatprep.subr.mxu0 0.0
    %220 = vmatpush1.msra.mxu0 %v183
    %221 = vmatprep.subr.mxu0 0.0
    %222 = vmatpush1.msra.mxu0 %v184
    %223 = vmatprep.subr.mxu0 0.0
    %224 = vmatpush1.msra.mxu0 %v185
    %225 = vmatprep.subr.mxu0 0.0
    %226 = vmatpush1.msra.mxu0 %v186
    %227 = vmatprep.subr.mxu0 0.0
    %228 = vmatpush1.msra.mxu0 %v187
    %229 = vmatprep.subr.mxu0 0.0
    %230 = vmatpush1.msra.mxu0 %v188
    %231 = vmatprep.subr.mxu0 0.0
    %232 = vmatpush1.msra.mxu0 %v189
    %233 = vmatprep.subr.mxu0 0.0
    %234 = vmatpush1.msra.mxu0 %v190
    %235 = vmatprep.subr.mxu0 0.0
    %236 = vmatpush1.msra.mxu0 %v191
    %237 = vmatprep.subr.mxu0 0.0
    %238 = vmatpush1.msra.mxu0 %v192
    %239 = vmatprep.subr.mxu0 0.0
    %240 = vmatpush1.msra.mxu0 %v193
    %241 = vmatprep.subr.mxu0 0.0
    %242 = vmatpush1.msra.mxu0 %v194
    %243 = vmatprep.subr.mxu0 0.0
    %244 = vmatpush1.msra.mxu0 %v195
    %245 = vmatprep.subr.mxu0 0.0
    %246 = vmatpush1.msra.mxu0 %v196
    %247 = vmatprep.subr.mxu0 0.0
    %248 = vmatpush1.msra.mxu0 %v197
    %249 = vmatprep.subr.mxu0 0.0
    %250 = vmatpush1.msra.mxu0 %v198
    %251 = vmatprep.subr.mxu0 0.0
    %252 = vmatpush1.msra.mxu0 %v199
    %253 = vmatprep.subr.mxu0 0.0
    %254 = vmatpush1.msra.mxu0 %v200
    %255 = vmatprep.subr.mxu0 0.0
    %256 = vmatpush1.msra.mxu0 %v201
    %257 = vmatprep.subr.mxu0 0.0
    %258 = vmatpush1.msra.mxu0 %v202
    %259 = vmatprep.subr.mxu0 0.0
    %260 = vmatpush1.msra.mxu0 %v203
    %261 = vmatprep.subr.mxu0 0.0
    %262 = vmatpush1.msra.mxu0 %v204
    %263 = vmatprep.subr.mxu0 0.0
    %264 = vmatpush1.msra.mxu0 %v205
    %265 = vmatprep.subr.mxu0 0.0
    %266 = vmatpush1.msra.mxu0 %v206
    %267 = vmatprep.subr.mxu0 0.0
    %268 = vmatpush1.msra.mxu0 %v207
    %269 = vmatprep.subr.mxu0 0.0
    %270 = vmatpush1.msra.mxu0 %v208
    %271 = vmatprep.subr.mxu0 0.0
    %272 = vmatpush1.msra.mxu0 %v209
    %273 = vmatprep.subr.mxu0 0.0
    %274 = vmatpush1.msra.mxu0 %v210
    %275 = vmatprep.mubr.f32.mxu0 %v178
    %276 = vmatmul.mubr.f32.gmra.mrb[0].mxu0 %v177
    %v277 = vpop.f32.mrb[0].mxu0
    %v278 = vadd.f32 %v92, %v277
    %v279 = vpop.f32.mrb[0].mxu0
    %280 = vdwg.mxu0
    %v281 = vtanh.pop %v278
    %s282 = sadd.s32 %s53, 1
    %v283 = vstv %s282
    %vm284 = vcmp.lt.s32.totalorder %v283, %v52
    %v285 = vsel %vm284, 1, 0
    %286 = vset.pattern.permute.xlu0 0
    %287 = vperm.xlu0 %286, %v285
    %v288 = vpop.permute.xlu0 %287
    %vm289 = vcmp.eq.s32.totalorder %v288, 1
    %v290 = vsel %vm289, %v281, 0.0
    %s291 = scalar_lea.vmem [#allocation8], 8
    %292 = vst [vmem:[%s291] sm:$0xff] %v290
    %v293 = vsel %vm289, %v281, %v178
    %294 = vst [vmem:[#allocation2] sm:$0xff] %v293
    %s295 = scalar_lea.vmem [#allocation3], 16
    %v296 = vld [vmem:[%s295] sm:$0xff]
    %v297 = vld [vmem:[#allocation2] sm:$0xff]
    %v298 = vld [vmem:[#allocation6] sm:$0xff]
    %v299 = vld [vmem:[#allocation6 + $0x8] sm:$0xff]
    %v300 = vld [vmem:[#allocation6 + $0x10] sm:$0xff]
    %v301 = vld [vmem:[#allocation6 + $0x18] sm:$0xff]
    %v302 = vld [vmem:[#allocation6 + $0x20] sm:$0xff]
    %v303 = vld [vmem:[#allocation6 + $0x28] sm:$0xff]
    %v304 = vld [vmem:[#allocation6 + $0x30] sm:$0xff]
    %v305 = vld [vmem:[#allocation6 + $0x38] sm:$0xff]
    %v306 = vld [vmem:[#allocation6 + $0x40] sm:$0xff]
    %v307 = vld [vmem:[#allocation6 + $0x48] sm:$0xff]
    %v308 = vld [vmem:[#allocation6 + $0x50] sm:$0xff]
    %v309 = vld [vmem:[#allocation6 + $0x58] sm:$0xff]
    %v310 = vld [vmem:[#allocation6 + $0x60] sm:$0xff]
    %v311 = vld [vmem:[#allocation6 + $0x68] sm:$0xff]
    %v312 = vld [vmem:[#allocation6 + $0x70] sm:$0xff]
    %v313 = vld [vmem:[#allocation6 + $0x78] sm:$0xff]
    %v314 = vld [vmem:[#allocation6 + $0x80] sm:$0xff]
    %v315 = vld [vmem:[#allocation6 + $0x88] sm:$0xff]
    %v316 = vld [vmem:[#allocation6 + $0x90] sm:$0xff]
    %v317 = vld [vmem:[#allocation6 + $0x98] sm:$0xff]
    %v318 = vld [vmem:[#allocation6 + $0xa0] sm:$0xff]
    %v319 = vld [vmem:[#allocation6 + $0xa8] sm:$0xff]
    %v320 = vld [vmem:[#allocation6 + $0xb0] sm:$0xff]
    %v321 = vld [vmem:[#allocation6 + $0xb8] sm:$0xff]
    %v322 = vld [vmem:[#allocation6 + $0xc0] sm:$0xff]
    %v323 = vld [vmem:[#allocation6 + $0xc8] sm:$0xff]
    %v324 = vld [vmem:[#allocation6 + $0xd0] sm:$0xff]
    %v325 = vld [vmem:[#allocation6 + $0xd8] sm:$0xff]
    %v326 = vld [vmem:[#allocation6 + $0xe0] sm:$0xff]
    %v327 = vld [vmem:[#allocation6 + $0xe8] sm:$0xff]
    %v328 = vld [vmem:[#allocation6 + $0xf0] sm:$0xff]
    %v329 = vld [vmem:[#allocation6 + $0xf8] sm:$0xff]
    %330 = vmatprep.subr.mxu0 0.0
    %331 = vmatpush1.msra.mxu0 %v298
    %332 = vmatprep.subr.mxu0 0.0
    %333 = vmatpush1.msra.mxu0 %v299
    %334 = vmatprep.subr.mxu0 0.0
    %335 = vmatpush1.msra.mxu0 %v300
    %336 = vmatprep.subr.mxu0 0.0
    %337 = vmatpush1.msra.mxu0 %v301
    %338 = vmatprep.subr.mxu0 0.0
    %339 = vmatpush1.msra.mxu0 %v302
    %340 = vmatprep.subr.mxu0 0.0
    %341 = vmatpush1.msra.mxu0 %v303
    %342 = vmatprep.subr.mxu0 0.0
    %343 = vmatpush1.msra.mxu0 %v304
    %344 = vmatprep.subr.mxu0 0.0
    %345 = vmatpush1.msra.mxu0 %v305
    %346 = vmatprep.subr.mxu0 0.0
    %347 = vmatpush1.msra.mxu0 %v306
    %348 = vmatprep.subr.mxu0 0.0
    %349 = vmatpush1.msra.mxu0 %v307
    %350 = vmatprep.subr.mxu0 0.0
    %351 = vmatpush1.msra.mxu0 %v308
    %352 = vmatprep.subr.mxu0 0.0
    %353 = vmatpush1.msra.mxu0 %v309
    %354 = vmatprep.subr.mxu0 0.0
    %355 = vmatpush1.msra.mxu0 %v310
    %356 = vmatprep.subr.mxu0 0.0
    %357 = vmatpush1.msra.mxu0 %v311
    %358 = vmatprep.subr.mxu0 0.0
    %359 = vmatpush1.msra.mxu0 %v312
    %360 = vmatprep.subr.mxu0 0.0
    %361 = vmatpush1.msra.mxu0 %v313
    %362 = vmatprep.subr.mxu0 0.0
    %363 = vmatpush1.msra.mxu0 %v314
    %364 = vmatprep.subr.mxu0 0.0
    %365 = vmatpush1.msra.mxu0 %v315
    %366 = vmatprep.subr.mxu0 0.0
    %367 = vmatpush1.msra.mxu0 %v316
    %368 = vmatprep.subr.mxu0 0.0
    %369 = vmatpush1.msra.mxu0 %v317
    %370 = vmatprep.subr.mxu0 0.0
    %371 = vmatpush1.msra.mxu0 %v318
    %372 = vmatprep.subr.mxu0 0.0
    %373 = vmatpush1.msra.mxu0 %v319
    %374 = vmatprep.subr.mxu0 0.0
    %375 = vmatpush1.msra.mxu0 %v320
    %376 = vmatprep.subr.mxu0 0.0
    %377 = vmatpush1.msra.mxu0 %v321
    %378 = vmatprep.subr.mxu0 0.0
    %379 = vmatpush1.msra.mxu0 %v322
    %380 = vmatprep.subr.mxu0 0.0
    %381 = vmatpush1.msra.mxu0 %v323
    %382 = vmatprep.subr.mxu0 0.0
    %383 = vmatpush1.msra.mxu0 %v324
    %384 = vmatprep.subr.mxu0 0.0
    %385 = vmatpush1.msra.mxu0 %v325
    %386 = vmatprep.subr.mxu0 0.0
    %387 = vmatpush1.msra.mxu0 %v326
    %388 = vmatprep.subr.mxu0 0.0
    %389 = vmatpush1.msra.mxu0 %v327
    %390 = vmatprep.subr.mxu0 0.0
    %391 = vmatpush1.msra.mxu0 %v328
    %392 = vmatprep.subr.mxu0 0.0
    %393 = vmatpush1.msra.mxu0 %v329
    %394 = vmatprep.mubr.f32.mxu0 %v297
    %395 = vmatmul.mubr.f32.gmra.mrb[0].mxu0 %v296
    %v396 = vpop.f32.mrb[0].mxu0
    %v397 = vadd.f32 %v92, %v396
    %v398 = vpop.f32.mrb[0].mxu0
    %399 = vdwg.mxu0
    %v400 = vtanh.pop %v397
    %s401 = sadd.s32 %s53, 2
    %v402 = vstv %s401
    %vm403 = vcmp.lt.s32.totalorder %v402, %v52
    %v404 = vsel %vm403, 1, 0
    %405 = vset.pattern.permute.xlu0 0
    %406 = vperm.xlu0 %405, %v404
    %v407 = vpop.permute.xlu0 %406
    %vm408 = vcmp.eq.s32.totalorder %v407, 1
    %v409 = vsel %vm408, %v400, 0.0
    %s410 = scalar_lea.vmem [#allocation8], 16
    %411 = vst [vmem:[%s410] sm:$0xff] %v409
    %v412 = vsel %vm408, %v400, %v297
    %413 = vst [vmem:[#allocation2] sm:$0xff] %v412
    %s414 = scalar_lea.vmem [#allocation3], 24
    %v415 = vld [vmem:[%s414] sm:$0xff]
    %v416 = vld [vmem:[#allocation2] sm:$0xff]
    %v417 = vld [vmem:[#allocation6] sm:$0xff]
    %v418 = vld [vmem:[#allocation6 + $0x8] sm:$0xff]
    %v419 = vld [vmem:[#allocation6 + $0x10] sm:$0xff]
    %v420 = vld [vmem:[#allocation6 + $0x18] sm:$0xff]
    %v421 = vld [vmem:[#allocation6 + $0x20] sm:$0xff]
    %v422 = vld [vmem:[#allocation6 + $0x28] sm:$0xff]
    %v423 = vld [vmem:[#allocation6 + $0x30] sm:$0xff]
    %v424 = vld [vmem:[#allocation6 + $0x38] sm:$0xff]
    %v425 = vld [vmem:[#allocation6 + $0x40] sm:$0xff]
    %v426 = vld [vmem:[#allocation6 + $0x48] sm:$0xff]
    %v427 = vld [vmem:[#allocation6 + $0x50] sm:$0xff]
    %v428 = vld [vmem:[#allocation6 + $0x58] sm:$0xff]
    %v429 = vld [vmem:[#allocation6 + $0x60] sm:$0xff]
    %v430 = vld [vmem:[#allocation6 + $0x68] sm:$0xff]
    %v431 = vld [vmem:[#allocation6 + $0x70] sm:$0xff]
    %v432 = vld [vmem:[#allocation6 + $0x78] sm:$0xff]
    %v433 = vld [vmem:[#allocation6 + $0x80] sm:$0xff]
    %v434 = vld [vmem:[#allocation6 + $0x88] sm:$0xff]
    %v435 = vld [vmem:[#allocation6 + $0x90] sm:$0xff]
    %v436 = vld [vmem:[#allocation6 + $0x98] sm:$0xff]
    %v437 = vld [vmem:[#allocation6 + $0xa0] sm:$0xff]
    %v438 = vld [vmem:[#allocation6 + $0xa8] sm:$0xff]
    %v439 = vld [vmem:[#allocation6 + $0xb0] sm:$0xff]
    %v440 = vld [vmem:[#allocation6 + $0xb8] sm:$0xff]
    %v441 = vld [vmem:[#allocation6 + $0xc0] sm:$0xff]
    %v442 = vld [vmem:[#allocation6 + $0xc8] sm:$0xff]
    %v443 = vld [vmem:[#allocation6 + $0xd0] sm:$0xff]
    %v444 = vld [vmem:[#allocation6 + $0xd8] sm:$0xff]
    %v445 = vld [vmem:[#allocation6 + $0xe0] sm:$0xff]
    %v446 = vld [vmem:[#allocation6 + $0xe8] sm:$0xff]
    %v447 = vld [vmem:[#allocation6 + $0xf0] sm:$0xff]
    %v448 = vld [vmem:[#allocation6 + $0xf8] sm:$0xff]
    %449 = vmatprep.subr.mxu0 0.0
    %450 = vmatpush1.msra.mxu0 %v417
    %451 = vmatprep.subr.mxu0 0.0
    %452 = vmatpush1.msra.mxu0 %v418
    %453 = vmatprep.subr.mxu0 0.0
    %454 = vmatpush1.msra.mxu0 %v419
    %455 = vmatprep.subr.mxu0 0.0
    %456 = vmatpush1.msra.mxu0 %v420
    %457 = vmatprep.subr.mxu0 0.0
    %458 = vmatpush1.msra.mxu0 %v421
    %459 = vmatprep.subr.mxu0 0.0
    %460 = vmatpush1.msra.mxu0 %v422
    %461 = vmatprep.subr.mxu0 0.0
    %462 = vmatpush1.msra.mxu0 %v423
    %463 = vmatprep.subr.mxu0 0.0
    %464 = vmatpush1.msra.mxu0 %v424
    %465 = vmatprep.subr.mxu0 0.0
    %466 = vmatpush1.msra.mxu0 %v425
    %467 = vmatprep.subr.mxu0 0.0
    %468 = vmatpush1.msra.mxu0 %v426
    %469 = vmatprep.subr.mxu0 0.0
    %470 = vmatpush1.msra.mxu0 %v427
    %471 = vmatprep.subr.mxu0 0.0
    %472 = vmatpush1.msra.mxu0 %v428
    %473 = vmatprep.subr.mxu0 0.0
    %474 = vmatpush1.msra.mxu0 %v429
    %475 = vmatprep.subr.mxu0 0.0
    %476 = vmatpush1.msra.mxu0 %v430
    %477 = vmatprep.subr.mxu0 0.0
    %478 = vmatpush1.msra.mxu0 %v431
    %479 = vmatprep.subr.mxu0 0.0
    %480 = vmatpush1.msra.mxu0 %v432
    %481 = vmatprep.subr.mxu0 0.0
    %482 = vmatpush1.msra.mxu0 %v433
    %483 = vmatprep.subr.mxu0 0.0
    %484 = vmatpush1.msra.mxu0 %v434
    %485 = vmatprep.subr.mxu0 0.0
    %486 = vmatpush1.msra.mxu0 %v435
    %487 = vmatprep.subr.mxu0 0.0
    %488 = vmatpush1.msra.mxu0 %v436
    %489 = vmatprep.subr.mxu0 0.0
    %490 = vmatpush1.msra.mxu0 %v437
    %491 = vmatprep.subr.mxu0 0.0
    %492 = vmatpush1.msra.mxu0 %v438
    %493 = vmatprep.subr.mxu0 0.0
    %494 = vmatpush1.msra.mxu0 %v439
    %495 = vmatprep.subr.mxu0 0.0
    %496 = vmatpush1.msra.mxu0 %v440
    %497 = vmatprep.subr.mxu0 0.0
    %498 = vmatpush1.msra.mxu0 %v441
    %499 = vmatprep.subr.mxu0 0.0
    %500 = vmatpush1.msra.mxu0 %v442
    %501 = vmatprep.subr.mxu0 0.0
    %502 = vmatpush1.msra.mxu0 %v443
    %503 = vmatprep.subr.mxu0 0.0
    %504 = vmatpush1.msra.mxu0 %v444
    %505 = vmatprep.subr.mxu0 0.0
    %506 = vmatpush1.msra.mxu0 %v445
    %507 = vmatprep.subr.mxu0 0.0
    %508 = vmatpush1.msra.mxu0 %v446
    %509 = vmatprep.subr.mxu0 0.0
    %510 = vmatpush1.msra.mxu0 %v447
    %511 = vmatprep.subr.mxu0 0.0
    %512 = vmatpush1.msra.mxu0 %v448
    %513 = vmatprep.mubr.f32.mxu0 %v416
    %514 = vmatmul.mubr.f32.gmra.mrb[0].mxu0 %v415
    %v515 = vpop.f32.mrb[0].mxu0
    %v516 = vadd.f32 %v92, %v515
    %v517 = vpop.f32.mrb[0].mxu0
    %518 = vdwg.mxu0
    %v519 = vtanh.pop %v516
    %s520 = sadd.s32 %s53, 3
    %v521 = vstv %s520
    %vm522 = vcmp.lt.s32.totalorder %v521, %v52
    %v523 = vsel %vm522, 1, 0
    %524 = vset.pattern.permute.xlu0 0
    %525 = vperm.xlu0 %524, %v523
    %v526 = vpop.permute.xlu0 %525
    %vm527 = vcmp.eq.s32.totalorder %v526, 1
    %v528 = vsel %vm527, %v519, 0.0
    %s529 = scalar_lea.vmem [#allocation8], 24
    %530 = vst [vmem:[%s529] sm:$0xff] %v528
    %v531 = vsel %vm527, %v519, %v416
    %532 = vst [vmem:[#allocation2] sm:$0xff] %v531
    %s533 = scalar_lea.vmem [#allocation3], 32
    %v534 = vld [vmem:[%s533] sm:$0xff]
    %v535 = vld [vmem:[#allocation2] sm:$0xff]
    %v536 = vld [vmem:[#allocation6] sm:$0xff]
    %v537 = vld [vmem:[#allocation6 + $0x8] sm:$0xff]
    %v538 = vld [vmem:[#allocation6 + $0x10] sm:$0xff]
    %v539 = vld [vmem:[#allocation6 + $0x18] sm:$0xff]
    %v540 = vld [vmem:[#allocation6 + $0x20] sm:$0xff]
    %v541 = vld [vmem:[#allocation6 + $0x28] sm:$0xff]
    %v542 = vld [vmem:[#allocation6 + $0x30] sm:$0xff]
    %v543 = vld [vmem:[#allocation6 + $0x38] sm:$0xff]
    %v544 = vld [vmem:[#allocation6 + $0x40] sm:$0xff]
    %v545 = vld [vmem:[#allocation6 + $0x48] sm:$0xff]
    %v546 = vld [vmem:[#allocation6 + $0x50] sm:$0xff]
    %v547 = vld [vmem:[#allocation6 + $0x58] sm:$0xff]
    %v548 = vld [vmem:[#allocation6 + $0x60] sm:$0xff]
    %v549 = vld [vmem:[#allocation6 + $0x68] sm:$0xff]
    %v550 = vld [vmem:[#allocation6 + $0x70] sm:$0xff]
    %v551 = vld [vmem:[#allocation6 + $0x78] sm:$0xff]
    %v552 = vld [vmem:[#allocation6 + $0x80] sm:$0xff]
    %v553 = vld [vmem:[#allocation6 + $0x88] sm:$0xff]
    %v554 = vld [vmem:[#allocation6 + $0x90] sm:$0xff]
    %v555 = vld [vmem:[#allocation6 + $0x98] sm:$0xff]
    %v556 = vld [vmem:[#allocation6 + $0xa0] sm:$0xff]
    %v557 = vld [vmem:[#allocation6 + $0xa8] sm:$0xff]
    %v558 = vld [vmem:[#allocation6 + $0xb0] sm:$0xff]
    %v559 = vld [vmem:[#allocation6 + $0xb8] sm:$0xff]
    %v560 = vld [vmem:[#allocation6 + $0xc0] sm:$0xff]
    %v561 = vld [vmem:[#allocation6 + $0xc8] sm:$0xff]
    %v562 = vld [vmem:[#allocation6 + $0xd0] sm:$0xff]
    %v563 = vld [vmem:[#allocation6 + $0xd8] sm:$0xff]
    %v564 = vld [vmem:[#allocation6 + $0xe0] sm:$0xff]
    %v565 = vld [vmem:[#allocation6 + $0xe8] sm:$0xff]
    %v566 = vld [vmem:[#allocation6 + $0xf0] sm:$0xff]
    %v567 = vld [vmem:[#allocation6 + $0xf8] sm:$0xff]
    %568 = vmatprep.subr.mxu0 0.0
    %569 = vmatpush1.msra.mxu0 %v536
    %570 = vmatprep.subr.mxu0 0.0
    %571 = vmatpush1.msra.mxu0 %v537
    %572 = vmatprep.subr.mxu0 0.0
    %573 = vmatpush1.msra.mxu0 %v538
    %574 = vmatprep.subr.mxu0 0.0
    %575 = vmatpush1.msra.mxu0 %v539
    %576 = vmatprep.subr.mxu0 0.0
    %577 = vmatpush1.msra.mxu0 %v540
    %578 = vmatprep.subr.mxu0 0.0
    %579 = vmatpush1.msra.mxu0 %v541
    %580 = vmatprep.subr.mxu0 0.0
    %581 = vmatpush1.msra.mxu0 %v542
    %582 = vmatprep.subr.mxu0 0.0
    %583 = vmatpush1.msra.mxu0 %v543
    %584 = vmatprep.subr.mxu0 0.0
    %585 = vmatpush1.msra.mxu0 %v544
    %586 = vmatprep.subr.mxu0 0.0
    %587 = vmatpush1.msra.mxu0 %v545
    %588 = vmatprep.subr.mxu0 0.0
    %589 = vmatpush1.msra.mxu0 %v546
    %590 = vmatprep.subr.mxu0 0.0
    %591 = vmatpush1.msra.mxu0 %v547
    %592 = vmatprep.subr.mxu0 0.0
    %593 = vmatpush1.msra.mxu0 %v548
    %594 = vmatprep.subr.mxu0 0.0
    %595 = vmatpush1.msra.mxu0 %v549
    %596 = vmatprep.subr.mxu0 0.0
    %597 = vmatpush1.msra.mxu0 %v550
    %598 = vmatprep.subr.mxu0 0.0
    %599 = vmatpush1.msra.mxu0 %v551
    %600 = vmatprep.subr.mxu0 0.0
    %601 = vmatpush1.msra.mxu0 %v552
    %602 = vmatprep.subr.mxu0 0.0
    %603 = vmatpush1.msra.mxu0 %v553
    %604 = vmatprep.subr.mxu0 0.0
    %605 = vmatpush1.msra.mxu0 %v554
    %606 = vmatprep.subr.mxu0 0.0
    %607 = vmatpush1.msra.mxu0 %v555
    %608 = vmatprep.subr.mxu0 0.0
    %609 = vmatpush1.msra.mxu0 %v556
    %610 = vmatprep.subr.mxu0 0.0
    %611 = vmatpush1.msra.mxu0 %v557
    %612 = vmatprep.subr.mxu0 0.0
    %613 = vmatpush1.msra.mxu0 %v558
    %614 = vmatprep.subr.mxu0 0.0
    %615 = vmatpush1.msra.mxu0 %v559
    %616 = vmatprep.subr.mxu0 0.0
    %617 = vmatpush1.msra.mxu0 %v560
    %618 = vmatprep.subr.mxu0 0.0
    %619 = vmatpush1.msra.mxu0 %v561
    %620 = vmatprep.subr.mxu0 0.0
    %621 = vmatpush1.msra.mxu0 %v562
    %622 = vmatprep.subr.mxu0 0.0
    %623 = vmatpush1.msra.mxu0 %v563
    %624 = vmatprep.subr.mxu0 0.0
    %625 = vmatpush1.msra.mxu0 %v564
    %626 = vmatprep.subr.mxu0 0.0
    %627 = vmatpush1.msra.mxu0 %v565
    %628 = vmatprep.subr.mxu0 0.0
    %629 = vmatpush1.msra.mxu0 %v566
    %630 = vmatprep.subr.mxu0 0.0
    %631 = vmatpush1.msra.mxu0 %v567
    %632 = vmatprep.mubr.f32.mxu0 %v535
    %633 = vmatmul.mubr.f32.gmra.mrb[0].mxu0 %v534
    %v634 = vpop.f32.mrb[0].mxu0
    %v635 = vadd.f32 %v92, %v634
    %v636 = vpop.f32.mrb[0].mxu0
    %637 = vdwg.mxu0
    %v638 = vtanh.pop %v635
    %s639 = sadd.s32 %s53, 4
    %v640 = vstv %s639
    %vm641 = vcmp.lt.s32.totalorder %v640, %v52
    %v642 = vsel %vm641, 1, 0
    %643 = vset.pattern.permute.xlu0 0
    %644 = vperm.xlu0 %643, %v642
    %v645 = vpop.permute.xlu0 %644
    %vm646 = vcmp.eq.s32.totalorder %v645, 1
    %v647 = vsel %vm646, %v638, 0.0
    %s648 = scalar_lea.vmem [#allocation8], 32
    %649 = vst [vmem:[%s648] sm:$0xff] %v647
    %v650 = vsel %vm646, %v638, %v535
    %651 = vst [vmem:[#allocation2] sm:$0xff] %v650
    %s652 = scalar_lea.vmem [#allocation3], 40
    %v653 = vld [vmem:[%s652] sm:$0xff]
    %v654 = vld [vmem:[#allocation2] sm:$0xff]
    %v655 = vld [vmem:[#allocation6] sm:$0xff]
    %v656 = vld [vmem:[#allocation6 + $0x8] sm:$0xff]
    %v657 = vld [vmem:[#allocation6 + $0x10] sm:$0xff]
    %v658 = vld [vmem:[#allocation6 + $0x18] sm:$0xff]
    %v659 = vld [vmem:[#allocation6 + $0x20] sm:$0xff]
    %v660 = vld [vmem:[#allocation6 + $0x28] sm:$0xff]
    %v661 = vld [vmem:[#allocation6 + $0x30] sm:$0xff]
    %v662 = vld [vmem:[#allocation6 + $0x38] sm:$0xff]
    %v663 = vld [vmem:[#allocation6 + $0x40] sm:$0xff]
    %v664 = vld [vmem:[#allocation6 + $0x48] sm:$0xff]
    %v665 = vld [vmem:[#allocation6 + $0x50] sm:$0xff]
    %v666 = vld [vmem:[#allocation6 + $0x58] sm:$0xff]
    %v667 = vld [vmem:[#allocation6 + $0x60] sm:$0xff]
    %v668 = vld [vmem:[#allocation6 + $0x68] sm:$0xff]
    %v669 = vld [vmem:[#allocation6 + $0x70] sm:$0xff]
    %v670 = vld [vmem:[#allocation6 + $0x78] sm:$0xff]
    %v671 = vld [vmem:[#allocation6 + $0x80] sm:$0xff]
    %v672 = vld [vmem:[#allocation6 + $0x88] sm:$0xff]
    %v673 = vld [vmem:[#allocation6 + $0x90] sm:$0xff]
    %v674 = vld [vmem:[#allocation6 + $0x98] sm:$0xff]
    %v675 = vld [vmem:[#allocation6 + $0xa0] sm:$0xff]
    %v676 = vld [vmem:[#allocation6 + $0xa8] sm:$0xff]
    %v677 = vld [vmem:[#allocation6 + $0xb0] sm:$0xff]
    %v678 = vld [vmem:[#allocation6 + $0xb8] sm:$0xff]
    %v679 = vld [vmem:[#allocation6 + $0xc0] sm:$0xff]
    %v680 = vld [vmem:[#allocation6 + $0xc8] sm:$0xff]
    %v681 = vld [vmem:[#allocation6 + $0xd0] sm:$0xff]
    %v682 = vld [vmem:[#allocation6 + $0xd8] sm:$0xff]
    %v683 = vld [vmem:[#allocation6 + $0xe0] sm:$0xff]
    %v684 = vld [vmem:[#allocation6 + $0xe8] sm:$0xff]
    %v685 = vld [vmem:[#allocation6 + $0xf0] sm:$0xff]
    %v686 = vld [vmem:[#allocation6 + $0xf8] sm:$0xff]
    %687 = vmatprep.subr.mxu0 0.0
    %688 = vmatpush1.msra.mxu0 %v655
    %689 = vmatprep.subr.mxu0 0.0
    %690 = vmatpush1.msra.mxu0 %v656
    %691 = vmatprep.subr.mxu0 0.0
    %692 = vmatpush1.msra.mxu0 %v657
    %693 = vmatprep.subr.mxu0 0.0
    %694 = vmatpush1.msra.mxu0 %v658
    %695 = vmatprep.subr.mxu0 0.0
    %696 = vmatpush1.msra.mxu0 %v659
    %697 = vmatprep.subr.mxu0 0.0
    %698 = vmatpush1.msra.mxu0 %v660
    %699 = vmatprep.subr.mxu0 0.0
    %700 = vmatpush1.msra.mxu0 %v661
    %701 = vmatprep.subr.mxu0 0.0
    %702 = vmatpush1.msra.mxu0 %v662
    %703 = vmatprep.subr.mxu0 0.0
    %704 = vmatpush1.msra.mxu0 %v663
    %705 = vmatprep.subr.mxu0 0.0
    %706 = vmatpush1.msra.mxu0 %v664
    %707 = vmatprep.subr.mxu0 0.0
    %708 = vmatpush1.msra.mxu0 %v665
    %709 = vmatprep.subr.mxu0 0.0
    %710 = vmatpush1.msra.mxu0 %v666
    %711 = vmatprep.subr.mxu0 0.0
    %712 = vmatpush1.msra.mxu0 %v667
    %713 = vmatprep.subr.mxu0 0.0
    %714 = vmatpush1.msra.mxu0 %v668
    %715 = vmatprep.subr.mxu0 0.0
    %716 = vmatpush1.msra.mxu0 %v669
    %717 = vmatprep.subr.mxu0 0.0
    %718 = vmatpush1.msra.mxu0 %v670
    %719 = vmatprep.subr.mxu0 0.0
    %720 = vmatpush1.msra.mxu0 %v671
    %721 = vmatprep.subr.mxu0 0.0
    %722 = vmatpush1.msra.mxu0 %v672
    %723 = vmatprep.subr.mxu0 0.0
    %724 = vmatpush1.msra.mxu0 %v673
    %725 = vmatprep.subr.mxu0 0.0
    %726 = vmatpush1.msra.mxu0 %v674
    %727 = vmatprep.subr.mxu0 0.0
    %728 = vmatpush1.msra.mxu0 %v675
    %729 = vmatprep.subr.mxu0 0.0
    %730 = vmatpush1.msra.mxu0 %v676
    %731 = vmatprep.subr.mxu0 0.0
    %732 = vmatpush1.msra.mxu0 %v677
    %733 = vmatprep.subr.mxu0 0.0
    %734 = vmatpush1.msra.mxu0 %v678
    %735 = vmatprep.subr.mxu0 0.0
    %736 = vmatpush1.msra.mxu0 %v679
    %737 = vmatprep.subr.mxu0 0.0
    %738 = vmatpush1.msra.mxu0 %v680
    %739 = vmatprep.subr.mxu0 0.0
    %740 = vmatpush1.msra.mxu0 %v681
    %741 = vmatprep.subr.mxu0 0.0
    %742 = vmatpush1.msra.mxu0 %v682
    %743 = vmatprep.subr.mxu0 0.0
    %744 = vmatpush1.msra.mxu0 %v683
    %745 = vmatprep.subr.mxu0 0.0
    %746 = vmatpush1.msra.mxu0 %v684
    %747 = vmatprep.subr.mxu0 0.0
    %748 = vmatpush1.msra.mxu0 %v685
    %749 = vmatprep.subr.mxu0 0.0
    %750 = vmatpush1.msra.mxu0 %v686
    %751 = vmatprep.mubr.f32.mxu0 %v654
    %752 = vmatmul.mubr.f32.gmra.mrb[0].mxu0 %v653
    %v753 = vpop.f32.mrb[0].mxu0
    %v754 = vadd.f32 %v92, %v753
    %v755 = vpop.f32.mrb[0].mxu0
    %756 = vdwg.mxu0
    %v757 = vtanh.pop %v754
    %s758 = sadd.s32 %s53, 5
    %v759 = vstv %s758
    %vm760 = vcmp.lt.s32.totalorder %v759, %v52
    %v761 = vsel %vm760, 1, 0
    %762 = vset.pattern.permute.xlu0 0
    %763 = vperm.xlu0 %762, %v761
    %v764 = vpop.permute.xlu0 %763
    %vm765 = vcmp.eq.s32.totalorder %v764, 1
    %v766 = vsel %vm765, %v757, 0.0
    %s767 = scalar_lea.vmem [#allocation8], 40
    %768 = vst [vmem:[%s767] sm:$0xff] %v766
    %v769 = vsel %vm765, %v757, %v654
    %770 = vst [vmem:[#allocation2] sm:$0xff] %v769
    %s771 = scalar_lea.vmem [#allocation3], 48
    %v772 = vld [vmem:[%s771] sm:$0xff]
    %v773 = vld [vmem:[#allocation2] sm:$0xff]
    %v774 = vld [vmem:[#allocation6] sm:$0xff]
    %v775 = vld [vmem:[#allocation6 + $0x8] sm:$0xff]
    %v776 = vld [vmem:[#allocation6 + $0x10] sm:$0xff]
    %v777 = vld [vmem:[#allocation6 + $0x18] sm:$0xff]
    %v778 = vld [vmem:[#allocation6 + $0x20] sm:$0xff]
    %v779 = vld [vmem:[#allocation6 + $0x28] sm:$0xff]
    %v780 = vld [vmem:[#allocation6 + $0x30] sm:$0xff]
    %v781 = vld [vmem:[#allocation6 + $0x38] sm:$0xff]
    %v782 = vld [vmem:[#allocation6 + $0x40] sm:$0xff]
    %v783 = vld [vmem:[#allocation6 + $0x48] sm:$0xff]
    %v784 = vld [vmem:[#allocation6 + $0x50] sm:$0xff]
    %v785 = vld [vmem:[#allocation6 + $0x58] sm:$0xff]
    %v786 = vld [vmem:[#allocation6 + $0x60] sm:$0xff]
    %v787 = vld [vmem:[#allocation6 + $0x68] sm:$0xff]
    %v788 = vld [vmem:[#allocation6 + $0x70] sm:$0xff]
    %v789 = vld [vmem:[#allocation6 + $0x78] sm:$0xff]
    %v790 = vld [vmem:[#allocation6 + $0x80] sm:$0xff]
    %v791 = vld [vmem:[#allocation6 + $0x88] sm:$0xff]
    %v792 = vld [vmem:[#allocation6 + $0x90] sm:$0xff]
    %v793 = vld [vmem:[#allocation6 + $0x98] sm:$0xff]
    %v794 = vld [vmem:[#allocation6 + $0xa0] sm:$0xff]
    %v795 = vld [vmem:[#allocation6 + $0xa8] sm:$0xff]
    %v796 = vld [vmem:[#allocation6 + $0xb0] sm:$0xff]
    %v797 = vld [vmem:[#allocation6 + $0xb8] sm:$0xff]
    %v798 = vld [vmem:[#allocation6 + $0xc0] sm:$0xff]
    %v799 = vld [vmem:[#allocation6 + $0xc8] sm:$0xff]
    %v800 = vld [vmem:[#allocation6 + $0xd0] sm:$0xff]
    %v801 = vld [vmem:[#allocation6 + $0xd8] sm:$0xff]
    %v802 = vld [vmem:[#allocation6 + $0xe0] sm:$0xff]
    %v803 = vld [vmem:[#allocation6 + $0xe8] sm:$0xff]
    %v804 = vld [vmem:[#allocation6 + $0xf0] sm:$0xff]
    %v805 = vld [vmem:[#allocation6 + $0xf8] sm:$0xff]
    %806 = vmatprep.subr.mxu0 0.0
    %807 = vmatpush1.msra.mxu0 %v774
    %808 = vmatprep.subr.mxu0 0.0
    %809 = vmatpush1.msra.mxu0 %v775
    %810 = vmatprep.subr.mxu0 0.0
    %811 = vmatpush1.msra.mxu0 %v776
    %812 = vmatprep.subr.mxu0 0.0
    %813 = vmatpush1.msra.mxu0 %v777
    %814 = vmatprep.subr.mxu0 0.0
    %815 = vmatpush1.msra.mxu0 %v778
    %816 = vmatprep.subr.mxu0 0.0
    %817 = vmatpush1.msra.mxu0 %v779
    %818 = vmatprep.subr.mxu0 0.0
    %819 = vmatpush1.msra.mxu0 %v780
    %820 = vmatprep.subr.mxu0 0.0
    %821 = vmatpush1.msra.mxu0 %v781
    %822 = vmatprep.subr.mxu0 0.0
    %823 = vmatpush1.msra.mxu0 %v782
    %824 = vmatprep.subr.mxu0 0.0
    %825 = vmatpush1.msra.mxu0 %v783
    %826 = vmatprep.subr.mxu0 0.0
    %827 = vmatpush1.msra.mxu0 %v784
    %828 = vmatprep.subr.mxu0 0.0
    %829 = vmatpush1.msra.mxu0 %v785
    %830 = vmatprep.subr.mxu0 0.0
    %831 = vmatpush1.msra.mxu0 %v786
    %832 = vmatprep.subr.mxu0 0.0
    %833 = vmatpush1.msra.mxu0 %v787
    %834 = vmatprep.subr.mxu0 0.0
    %835 = vmatpush1.msra.mxu0 %v788
    %836 = vmatprep.subr.mxu0 0.0
    %837 = vmatpush1.msra.mxu0 %v789
    %838 = vmatprep.subr.mxu0 0.0
    %839 = vmatpush1.msra.mxu0 %v790
    %840 = vmatprep.subr.mxu0 0.0
    %841 = vmatpush1.msra.mxu0 %v791
    %842 = vmatprep.subr.mxu0 0.0
    %843 = vmatpush1.msra.mxu0 %v792
    %844 = vmatprep.subr.mxu0 0.0
    %845 = vmatpush1.msra.mxu0 %v793
    %846 = vmatprep.subr.mxu0 0.0
    %847 = vmatpush1.msra.mxu0 %v794
    %848 = vmatprep.subr.mxu0 0.0
    %849 = vmatpush1.msra.mxu0 %v795
    %850 = vmatprep.subr.mxu0 0.0
    %851 = vmatpush1.msra.mxu0 %v796
    %852 = vmatprep.subr.mxu0 0.0
    %853 = vmatpush1.msra.mxu0 %v797
    %854 = vmatprep.subr.mxu0 0.0
    %855 = vmatpush1.msra.mxu0 %v798
    %856 = vmatprep.subr.mxu0 0.0
    %857 = vmatpush1.msra.mxu0 %v799
    %858 = vmatprep.subr.mxu0 0.0
    %859 = vmatpush1.msra.mxu0 %v800
    %860 = vmatprep.subr.mxu0 0.0
    %861 = vmatpush1.msra.mxu0 %v801
    %862 = vmatprep.subr.mxu0 0.0
    %863 = vmatpush1.msra.mxu0 %v802
    %864 = vmatprep.subr.mxu0 0.0
    %865 = vmatpush1.msra.mxu0 %v803
    %866 = vmatprep.subr.mxu0 0.0
    %867 = vmatpush1.msra.mxu0 %v804
    %868 = vmatprep.subr.mxu0 0.0
    %869 = vmatpush1.msra.mxu0 %v805
    %870 = vmatprep.mubr.f32.mxu0 %v773
    %871 = vmatmul.mubr.f32.gmra.mrb[0].mxu0 %v772
    %v872 = vpop.f32.mrb[0].mxu0
    %v873 = vadd.f32 %v92, %v872
    %v874 = vpop.f32.mrb[0].mxu0
    %875 = vdwg.mxu0
    %v876 = vtanh.pop %v873
    %s877 = sadd.s32 %s53, 6
    %v878 = vstv %s877
    %vm879 = vcmp.lt.s32.totalorder %v878, %v52
    %v880 = vsel %vm879, 1, 0
    %881 = vset.pattern.permute.xlu0 0
    %882 = vperm.xlu0 %881, %v880
    %v883 = vpop.permute.xlu0 %882
    %vm884 = vcmp.eq.s32.totalorder %v883, 1
    %v885 = vsel %vm884, %v876, 0.0
    %s886 = scalar_lea.vmem [#allocation8], 48
    %887 = vst [vmem:[%s886] sm:$0xff] %v885
    %v888 = vsel %vm884, %v876, %v773
    %889 = vst [vmem:[#allocation2] sm:$0xff] %v888
    %s890 = scalar_lea.vmem [#allocation3], 56
    %v891 = vld [vmem:[%s890] sm:$0xff]
    %v892 = vld [vmem:[#allocation2] sm:$0xff]
    %v893 = vld [vmem:[#allocation6] sm:$0xff]
    %v894 = vld [vmem:[#allocation6 + $0x8] sm:$0xff]
    %v895 = vld [vmem:[#allocation6 + $0x10] sm:$0xff]
    %v896 = vld [vmem:[#allocation6 + $0x18] sm:$0xff]
    %v897 = vld [vmem:[#allocation6 + $0x20] sm:$0xff]
    %v898 = vld [vmem:[#allocation6 + $0x28] sm:$0xff]
    %v899 = vld [vmem:[#allocation6 + $0x30] sm:$0xff]
    %v900 = vld [vmem:[#allocation6 + $0x38] sm:$0xff]
    %v901 = vld [vmem:[#allocation6 + $0x40] sm:$0xff]
    %v902 = vld [vmem:[#allocation6 + $0x48] sm:$0xff]
    %v903 = vld [vmem:[#allocation6 + $0x50] sm:$0xff]
    %v904 = vld [vmem:[#allocation6 + $0x58] sm:$0xff]
    %v905 = vld [vmem:[#allocation6 + $0x60] sm:$0xff]
    %v906 = vld [vmem:[#allocation6 + $0x68] sm:$0xff]
    %v907 = vld [vmem:[#allocation6 + $0x70] sm:$0xff]
    %v908 = vld [vmem:[#allocation6 + $0x78] sm:$0xff]
    %v909 = vld [vmem:[#allocation6 + $0x80] sm:$0xff]
    %v910 = vld [vmem:[#allocation6 + $0x88] sm:$0xff]
    %v911 = vld [vmem:[#allocation6 + $0x90] sm:$0xff]
    %v912 = vld [vmem:[#allocation6 + $0x98] sm:$0xff]
    %v913 = vld [vmem:[#allocation6 + $0xa0] sm:$0xff]
    %v914 = vld [vmem:[#allocation6 + $0xa8] sm:$0xff]
    %v915 = vld [vmem:[#allocation6 + $0xb0] sm:$0xff]
    %v916 = vld [vmem:[#allocation6 + $0xb8] sm:$0xff]
    %v917 = vld [vmem:[#allocation6 + $0xc0] sm:$0xff]
    %v918 = vld [vmem:[#allocation6 + $0xc8] sm:$0xff]
    %v919 = vld [vmem:[#allocation6 + $0xd0] sm:$0xff]
    %v920 = vld [vmem:[#allocation6 + $0xd8] sm:$0xff]
    %v921 = vld [vmem:[#allocation6 + $0xe0] sm:$0xff]
    %v922 = vld [vmem:[#allocation6 + $0xe8] sm:$0xff]
    %v923 = vld [vmem:[#allocation6 + $0xf0] sm:$0xff]
    %v924 = vld [vmem:[#allocation6 + $0xf8] sm:$0xff]
    %925 = vmatprep.subr.mxu0 0.0
    %926 = vmatpush1.msra.mxu0 %v893
    %927 = vmatprep.subr.mxu0 0.0
    %928 = vmatpush1.msra.mxu0 %v894
    %929 = vmatprep.subr.mxu0 0.0
    %930 = vmatpush1.msra.mxu0 %v895
    %931 = vmatprep.subr.mxu0 0.0
    %932 = vmatpush1.msra.mxu0 %v896
    %933 = vmatprep.subr.mxu0 0.0
    %934 = vmatpush1.msra.mxu0 %v897
    %935 = vmatprep.subr.mxu0 0.0
    %936 = vmatpush1.msra.mxu0 %v898
    %937 = vmatprep.subr.mxu0 0.0
    %938 = vmatpush1.msra.mxu0 %v899
    %939 = vmatprep.subr.mxu0 0.0
    %940 = vmatpush1.msra.mxu0 %v900
    %941 = vmatprep.subr.mxu0 0.0
    %942 = vmatpush1.msra.mxu0 %v901
    %943 = vmatprep.subr.mxu0 0.0
    %944 = vmatpush1.msra.mxu0 %v902
    %945 = vmatprep.subr.mxu0 0.0
    %946 = vmatpush1.msra.mxu0 %v903
    %947 = vmatprep.subr.mxu0 0.0
    %948 = vmatpush1.msra.mxu0 %v904
    %949 = vmatprep.subr.mxu0 0.0
    %950 = vmatpush1.msra.mxu0 %v905
    %951 = vmatprep.subr.mxu0 0.0
    %952 = vmatpush1.msra.mxu0 %v906
    %953 = vmatprep.subr.mxu0 0.0
    %954 = vmatpush1.msra.mxu0 %v907
    %955 = vmatprep.subr.mxu0 0.0
    %956 = vmatpush1.msra.mxu0 %v908
    %957 = vmatprep.subr.mxu0 0.0
    %958 = vmatpush1.msra.mxu0 %v909
    %959 = vmatprep.subr.mxu0 0.0
    %960 = vmatpush1.msra.mxu0 %v910
    %961 = vmatprep.subr.mxu0 0.0
    %962 = vmatpush1.msra.mxu0 %v911
    %963 = vmatprep.subr.mxu0 0.0
    %964 = vmatpush1.msra.mxu0 %v912
    %965 = vmatprep.subr.mxu0 0.0
    %966 = vmatpush1.msra.mxu0 %v913
    %967 = vmatprep.subr.mxu0 0.0
    %968 = vmatpush1.msra.mxu0 %v914
    %969 = vmatprep.subr.mxu0 0.0
    %970 = vmatpush1.msra.mxu0 %v915
    %971 = vmatprep.subr.mxu0 0.0
    %972 = vmatpush1.msra.mxu0 %v916
    %973 = vmatprep.subr.mxu0 0.0
    %974 = vmatpush1.msra.mxu0 %v917
    %975 = vmatprep.subr.mxu0 0.0
    %976 = vmatpush1.msra.mxu0 %v918
    %977 = vmatprep.subr.mxu0 0.0
    %978 = vmatpush1.msra.mxu0 %v919
    %979 = vmatprep.subr.mxu0 0.0
    %980 = vmatpush1.msra.mxu0 %v920
    %981 = vmatprep.subr.mxu0 0.0
    %982 = vmatpush1.msra.mxu0 %v921
    %983 = vmatprep.subr.mxu0 0.0
    %984 = vmatpush1.msra.mxu0 %v922
    %985 = vmatprep.subr.mxu0 0.0
    %986 = vmatpush1.msra.mxu0 %v923
    %987 = vmatprep.subr.mxu0 0.0
    %988 = vmatpush1.msra.mxu0 %v924
    %989 = vmatprep.mubr.f32.mxu0 %v892
    %990 = vmatmul.mubr.f32.gmra.mrb[0].mxu0 %v891
    %v991 = vpop.f32.mrb[0].mxu0
    %v992 = vadd.f32 %v92, %v991
    %v993 = vpop.f32.mrb[0].mxu0
    %994 = vdwg.mxu0
    %v995 = vtanh.pop %v992
    %s996 = sadd.s32 %s53, 7
    %v997 = vstv %s996
    %vm998 = vcmp.lt.s32.totalorder %v997, %v52
    %v999 = vsel %vm998, 1, 0
    %1000 = vset.pattern.permute.xlu0 0
    %1001 = vperm.xlu0 %1000, %v999
    %v1002 = vpop.permute.xlu0 %1001
    %vm1003 = vcmp.eq.s32.totalorder %v1002, 1
    %v1004 = vsel %vm1003, %v995, 0.0
    %s1005 = scalar_lea.vmem [#allocation8], 56
    %1006 = vst [vmem:[%s1005] sm:$0xff] %v1004
    %v1007 = vsel %vm1003, %v995, %v892
    %1008 = vst [vmem:[#allocation2] sm:$0xff] %v1007
    // Predicated region
    $region30: #{tpu_custom_call.1} parent=1 // pred_check
      _
    $region31: #{tpu_custom_call.1} parent=1 // pred_check_branch
      %1010 = sbr.rel (0) target = $region33
    $region32: #{tpu_custom_call.1} parent=1 // pred_region
      %s1012 = ssub.s32 1024, 1024
      %1013 = vsyncadd [#allocation5], %s1012
      %s1014 = sshll.u32 [#allocation8], 4
      %s1015 = int_to_ptr.vmem [resolvable:$true] %s1014
      %1020 = dma.vmem_to_hbm [thread:$0]  %s1015, 1024, %s4, [#allocation5], 128, 128, 8
    $region33: #{tpu_custom_call.1} parent=1 // pred_fallthru
      _
    // Predicated region
    $region34: #{tpu_custom_call.1} parent=1 // pred_check
      _
    $region35: #{tpu_custom_call.1} parent=1 // pred_check_branch
      %1022 = sbr.rel (0) target = $region37
    $region36: #{tpu_custom_call.1} parent=1 // pred_region
      %1023 = dma.done [#allocation5], 1024
    $region37: #{tpu_custom_call.1} parent=1 // pred_fallthru
      _
    %1024 = vsyncpa [#allocation4], 1
    %1025 = vsyncpa [#allocation7], 1
    %1026 = vsyncpa [#allocation5], 1

</llo_original>
